<compile_context>
chip_gen: v7x
topology: tpu7x:2x2x1
jax: 0.10.0
libtpu: 0.0.40
codegen_flags: <defaults>
</compile_context>

<pallas_src>
import functools
from math import sqrt

import jax
import jax.numpy as jnp
from jax.experimental import pallas as pl
from jax.experimental.pallas import tpu as pltpu


def residual_mha_kernel(x_ref, wqkv_ref, bqkv_ref, woh_ref, bo_ref, o_ref,
                        *, num_heads, embed_size, seq_len, batch_block):
    B, N, D, H = batch_block, seq_len, embed_size, num_heads
    E = D // H
    mm_dtype = wqkv_ref.dtype                    # f32, or bf16 when wrapper casts

    x = x_ref[...]                               # (B, N, D) f32
    x_flat = x.reshape(B * N, D)                 # sublane-only reshape (free-ish)

    # Fused Q/K/V projection for every token of every batch element:
    # one (B*N, D) x (D, 3D) MXU pass; bias added on the f32 result.
    qkv = jnp.dot(x_flat.astype(mm_dtype), wqkv_ref[...],
                  preferred_element_type=jnp.float32) + bqkv_ref[...]  # (B*N, 3D) f32
    qkv = qkv.reshape(B, N, 3 * D)               # sublane-only reshape

    # Per-head attention; head outputs stay in vregs, no concat:
    #   attn @ wo == sum_h head_h @ wo[h*E:(h+1)*E, :]
    acc = jnp.zeros((B * N, D), jnp.float32)
    for h in range(H):                           # static, small H
        qh = qkv[:, :, 0 * D + h * E: 0 * D + (h + 1) * E]     # (B, N, E)
        kh = qkv[:, :, 1 * D + h * E: 1 * D + (h + 1) * E]
        vh = qkv[:, :, 2 * D + h * E: 2 * D + (h + 1) * E]

        # energy[b, i, j] = <q_h[b, i], k_h[b, j]>  (no transpose materialised)
        energy = jnp.einsum('bqe,bke->bqk',
                            qh.astype(mm_dtype), kh.astype(mm_dtype),
                            preferred_element_type=jnp.float32)  # (B, N, N) f32

        # Softmax over keys on UNscaled scores (matches the module); f32 math.
        m = jnp.max(energy, axis=-1, keepdims=True)
        p = jnp.exp(energy - m)
        p = p * pl.reciprocal(jnp.sum(p, axis=-1, keepdims=True), approx=True)
        # (the post-softmax 1/sqrt(D) is folded into woh_ref in the wrapper)

        head = jnp.einsum('bqk,bke->bqe',
                          p.astype(mm_dtype), vh.astype(mm_dtype),
                          preferred_element_type=jnp.float32)    # (B, N, E) f32

        acc = acc + jnp.dot(head.reshape(B * N, E).astype(mm_dtype),
                            woh_ref[h],
                            preferred_element_type=jnp.float32)  # (B*N, D) f32

    y = acc + bo_ref[...]                                        # bias unscaled
    o_ref[...] = (x + y.reshape(B, N, D)).astype(o_ref.dtype)    # fused residual


def residual_mha(x, params, num_heads, *, batch_block=None, use_bf16=False):
    """ResidualAdd(MHA): x (B, N, D) float32, params in PyTorch Linear convention."""
    B, N, D = x.shape
    H = num_heads
    E = D // H
    wq, bq, wk, bk, wv, bv, wo, bo = params

    if batch_block is None:
        batch_block = B          # all batch elements in one program (tiny per-elem work)
    assert B % batch_block == 0

    # Wrapper-side glue (free): fused QKV weight (D, 3D) pre-transposed, fused
    # bias (1, 3D); out-projection pre-transposed, scaled by 1/sqrt(D) and
    # split per head into (H, E, D) so the kernel never concatenates heads.
    wqkv = jnp.concatenate([wq.T, wk.T, wv.T], axis=1)           # (D, 3D)
    bqkv = jnp.concatenate([bq, bk, bv]).reshape(1, 3 * D)       # (1, 3D)
    woh = (wo.T * jnp.float32(1.0 / sqrt(D))).reshape(H, E, D)   # (H, E, D)
    bo2 = bo.reshape(1, D)                                       # (1, D) NOT scaled

    if use_bf16:
        # v6e/v7x: bf16-native MXU; accumulation/softmax/biases stay f32.
        wqkv = wqkv.astype(jnp.bfloat16)
        woh = woh.astype(jnp.bfloat16)

    kernel = functools.partial(residual_mha_kernel, num_heads=H, embed_size=D,
                               seq_len=N, batch_block=batch_block)

    w_bytes = int(wqkv.size * wqkv.dtype.itemsize + woh.size * woh.dtype.itemsize
                  + bqkv.size * 4 + bo2.size * 4)
    cost = pl.CostEstimate(
        flops=int(2 * B * N * (4 * D * D + 2 * N * D)),
        transcendentals=int(B * H * N * N),
        bytes_accessed=int(2 * B * N * D * x.dtype.itemsize) + w_bytes)

    return pl.pallas_call(
        kernel,
        out_shape=jax.ShapeDtypeStruct((B, N, D), x.dtype),
        grid_spec=pltpu.PrefetchScalarGridSpec(
            num_scalar_prefetch=0,
            grid=(B // batch_block,),
            in_specs=[
                pl.BlockSpec((batch_block, N, D), lambda b: (b, 0, 0)),
                pl.BlockSpec((D, 3 * D), lambda b: (0, 0)),      # fused QKV weight
                pl.BlockSpec((1, 3 * D), lambda b: (0, 0)),      # fused QKV bias
                pl.BlockSpec((H, E, D), lambda b: (0, 0, 0)),    # per-head out-proj w
                pl.BlockSpec((1, D), lambda b: (0, 0)),          # out-proj bias
            ],
            out_specs=pl.BlockSpec((batch_block, N, D), lambda b: (b, 0, 0))),
        compiler_params=pltpu.CompilerParams(
            dimension_semantics=("parallel",)),
        cost_estimate=cost,
    )(x, wqkv, bqkv, woh, bo2)


def residual_mha_reference(x, params, num_heads):
    """Pure-JAX mirror of the PyTorch forward: x + MHA(x)."""
    wq, bq, wk, bk, wv, bv, wo, bo = params
    B, N, D = x.shape
    E = D // num_heads
    q = (x @ wq.T + bq).reshape(B, N, num_heads, E)
    k = (x @ wk.T + bk).reshape(B, N, num_heads, E)
    v = (x @ wv.T + bv).reshape(B, N, num_heads, E)
    energy = jnp.einsum('bqhe,bkhe->bqhk', q, k)
    p = jax.nn.softmax(energy, axis=-1) / jnp.sqrt(jnp.float32(D))
    out = jnp.einsum('bihv,bvhd->bihd', p, v).reshape(B, N, D)
    return x + (out @ wo.T + bo)


def init_linear(key, in_f, out_f):
    # Deterministic init mimicking nn.Linear's default uniform(-1/sqrt(in), 1/sqrt(in)).
    kw, kb = jax.random.split(key)
    bound = 1.0 / (in_f ** 0.5)
    w = jax.random.uniform(kw, (out_f, in_f), jnp.float32, -bound, bound)
    b = jax.random.uniform(kb, (out_f,), jnp.float32, -bound, bound)
    return w, b


if __name__ == "__main__":
    B, N, D, H = 2, 8, 32, 4   # batch, seq, embed_size, num_heads

    key = jax.random.PRNGKey(0)
    kx, kq, kk, kv, ko = jax.random.split(key, 5)

    x = jax.random.normal(kx, (B, N, D), jnp.float32)
    wq, bq = init_linear(kq, D, D)
    wk, bk = init_linear(kk, D, D)
    wv, bv = init_linear(kv, D, D)
    wo, bo = init_linear(ko, D, D)
    params = (wq, bq, wk, bk, wv, bv, wo, bo)

    ref = residual_mha_reference(x, params, H)

    # fp32 path (default): tolerance relaxed only for the EUP approx reciprocal.
    out = jax.block_until_ready(residual_mha(x, params, H))
    assert out.shape == (B, N, D)
    assert jnp.allclose(out, ref, atol=5e-3, rtol=5e-3), "fp32 mismatch vs reference"

    # bf16 weight / matmul-operand path (v6e/v7x MXU-native): looser tolerance.
    out_bf16 = jax.block_until_ready(residual_mha(x, params, H, use_bf16=True))
    assert jnp.allclose(out_bf16, ref, atol=5e-2, rtol=5e-2), "bf16 mismatch vs reference"

    print("KERNEL_OK")
</pallas_src>

<mosaic_0001>
module attributes {stable_mosaic.version = 11 : i64} {
  func.func @residual_mha_kernel(%arg0: i32, %arg1: memref<2x8x32xf32, #tpu.memory_space<vmem>>, %arg2: memref<32x96xf32, #tpu.memory_space<vmem>>, %arg3: memref<1x96xf32, #tpu.memory_space<vmem>>, %arg4: memref<4x8x32xf32, #tpu.memory_space<vmem>>, %arg5: memref<1x32xf32, #tpu.memory_space<vmem>>, %arg6: memref<2x8x32xf32, #tpu.memory_space<vmem>>) attributes {dimension_semantics = [#tpu.dimension_semantics<parallel>], iteration_bounds = array<i64: 1>, scalar_prefetch = 0 : i64, scratch_operands = 0 : i64, tpu.core_type = #tpu.core_type<tc>, window_params = [{transform_indices = @transform_0, window_bounds = array<i64: 2, 8, 32>}, {pipeline_mode = #tpu.pipeline_mode<synchronous>, transform_indices = @transform_1, window_bounds = array<i64: 32, 96>}, {pipeline_mode = #tpu.pipeline_mode<synchronous>, transform_indices = @transform_2, window_bounds = array<i64: 1, 96>}, {pipeline_mode = #tpu.pipeline_mode<synchronous>, transform_indices = @transform_3, window_bounds = array<i64: 4, 8, 32>}, {pipeline_mode = #tpu.pipeline_mode<synchronous>, transform_indices = @transform_4, window_bounds = array<i64: 1, 32>}, {transform_indices = @transform_5, window_bounds = array<i64: 2, 8, 32>}]} {
    %c0 = arith.constant 0 : index
    %c0_0 = arith.constant 0 : index
    %c0_1 = arith.constant 0 : index
    %0 = vector.load %arg1[%c0, %c0_0, %c0_1] : memref<2x8x32xf32, #tpu.memory_space<vmem>>, vector<2x8x32xf32>
    %1 = vector.shape_cast %0 : vector<2x8x32xf32> to vector<16x32xf32>
    %c0_2 = arith.constant 0 : index
    %c0_3 = arith.constant 0 : index
    %2 = vector.load %arg2[%c0_2, %c0_3] : memref<32x96xf32, #tpu.memory_space<vmem>>, vector<32x96xf32>
    %cst = arith.constant dense<0.000000e+00> : vector<16x96xf32>
    %3 = tpu.matmul %1, %2, %cst {dimension_numbers = #tpu.dot_dimension_numbers<[1], [0], [0], [1], [0, 0, 1, 1], [], []>} : vector<16x32xf32>, vector<32x96xf32>, vector<16x96xf32> -> vector<16x96xf32>
    %c0_4 = arith.constant 0 : index
    %c0_5 = arith.constant 0 : index
    %4 = vector.load %arg3[%c0_4, %c0_5] : memref<1x96xf32, #tpu.memory_space<vmem>>, vector<1x96xf32>
    %5 = vector.broadcast %4 : vector<1x96xf32> to vector<16x96xf32>
    %6 = arith.addf %3, %5 : vector<16x96xf32>
    %7 = vector.shape_cast %6 : vector<16x96xf32> to vector<2x8x96xf32>
    %cst_6 = arith.constant 0.000000e+00 : f32
    %8 = vector.broadcast %cst_6 : f32 to vector<16x32xf32>
    %9 = vector.extract_strided_slice %7 {offsets = [0, 0, 0], sizes = [2, 8, 8], strides = [1, 1, 1]} : vector<2x8x96xf32> to vector<2x8x8xf32>
    %10 = vector.extract_strided_slice %7 {offsets = [0, 0, 32], sizes = [2, 8, 8], strides = [1, 1, 1]} : vector<2x8x96xf32> to vector<2x8x8xf32>
    %11 = vector.extract_strided_slice %7 {offsets = [0, 0, 64], sizes = [2, 8, 8], strides = [1, 1, 1]} : vector<2x8x96xf32> to vector<2x8x8xf32>
    "tpu.trace_start"() <{level = 10 : i32, message = "bqe,bke->bqk"}> : () -> ()
    %cst_7 = arith.constant dense<0.000000e+00> : vector<2x8x8xf32>
    %12 = tpu.matmul %9, %10, %cst_7 {dimension_numbers = #tpu.dot_dimension_numbers<[2], [2], [1], [1], [0, 0, 0, 1, 1, 1], [0], [0]>} : vector<2x8x8xf32>, vector<2x8x8xf32>, vector<2x8x8xf32> -> vector<2x8x8xf32>
    "tpu.trace_stop"() : () -> ()
    %cst_8 = arith.constant dense<0xFF800000> : vector<2x8xf32>
    %13 = vector.multi_reduction <maximumf>, %12, %cst_8 [2] : vector<2x8x8xf32> to vector<2x8xf32>
    %14 = vector.shape_cast %13 : vector<2x8xf32> to vector<2x8x1xf32>
    %15 = vector.broadcast %14 : vector<2x8x1xf32> to vector<2x8x8xf32>
    %16 = arith.subf %12, %15 : vector<2x8x8xf32>
    %17 = math.exp %16 : vector<2x8x8xf32>
    %cst_9 = arith.constant dense<0.000000e+00> : vector<2x8xf32>
    %18 = vector.multi_reduction <add>, %17, %cst_9 [2] : vector<2x8x8xf32> to vector<2x8xf32>
    %19 = vector.shape_cast %18 : vector<2x8xf32> to vector<2x8x1xf32>
    %20 = tpu.reciprocal %19 {approx = true} : vector<2x8x1xf32> -> vector<2x8x1xf32>
    %21 = vector.broadcast %20 : vector<2x8x1xf32> to vector<2x8x8xf32>
    %22 = arith.mulf %17, %21 : vector<2x8x8xf32>
    "tpu.trace_start"() <{level = 10 : i32, message = "bqk,bke->bqe"}> : () -> ()
    %cst_10 = arith.constant dense<0.000000e+00> : vector<2x8x8xf32>
    %23 = tpu.matmul %22, %11, %cst_10 {dimension_numbers = #tpu.dot_dimension_numbers<[2], [1], [1], [2], [0, 0, 0, 1, 1, 2], [0], [0]>} : vector<2x8x8xf32>, vector<2x8x8xf32>, vector<2x8x8xf32> -> vector<2x8x8xf32>
    "tpu.trace_stop"() : () -> ()
    %24 = vector.shape_cast %23 : vector<2x8x8xf32> to vector<16x8xf32>
    %c0_11 = arith.constant 0 : index
    %c0_12 = arith.constant 0 : index
    %c0_13 = arith.constant 0 : index
    %25 = vector.load %arg4[%c0_11, %c0_12, %c0_13] : memref<4x8x32xf32, #tpu.memory_space<vmem>>, vector<1x8x32xf32>
    %26 = vector.shape_cast %25 : vector<1x8x32xf32> to vector<8x32xf32>
    %cst_14 = arith.constant dense<0.000000e+00> : vector<16x32xf32>
    %27 = tpu.matmul %24, %26, %cst_14 {dimension_numbers = #tpu.dot_dimension_numbers<[1], [0], [0], [1], [0, 0, 1, 1], [], []>} : vector<16x8xf32>, vector<8x32xf32>, vector<16x32xf32> -> vector<16x32xf32>
    %28 = arith.addf %8, %27 : vector<16x32xf32>
    %29 = vector.extract_strided_slice %7 {offsets = [0, 0, 8], sizes = [2, 8, 8], strides = [1, 1, 1]} : vector<2x8x96xf32> to vector<2x8x8xf32>
    %30 = vector.extract_strided_slice %7 {offsets = [0, 0, 40], sizes = [2, 8, 8], strides = [1, 1, 1]} : vector<2x8x96xf32> to vector<2x8x8xf32>
    %31 = vector.extract_strided_slice %7 {offsets = [0, 0, 72], sizes = [2, 8, 8], strides = [1, 1, 1]} : vector<2x8x96xf32> to vector<2x8x8xf32>
    "tpu.trace_start"() <{level = 10 : i32, message = "bqe,bke->bqk"}> : () -> ()
    %cst_15 = arith.constant dense<0.000000e+00> : vector<2x8x8xf32>
    %32 = tpu.matmul %29, %30, %cst_15 {dimension_numbers = #tpu.dot_dimension_numbers<[2], [2], [1], [1], [0, 0, 0, 1, 1, 1], [0], [0]>} : vector<2x8x8xf32>, vector<2x8x8xf32>, vector<2x8x8xf32> -> vector<2x8x8xf32>
    "tpu.trace_stop"() : () -> ()
    %cst_16 = arith.constant dense<0xFF800000> : vector<2x8xf32>
    %33 = vector.multi_reduction <maximumf>, %32, %cst_16 [2] : vector<2x8x8xf32> to vector<2x8xf32>
    %34 = vector.shape_cast %33 : vector<2x8xf32> to vector<2x8x1xf32>
    %35 = vector.broadcast %34 : vector<2x8x1xf32> to vector<2x8x8xf32>
    %36 = arith.subf %32, %35 : vector<2x8x8xf32>
    %37 = math.exp %36 : vector<2x8x8xf32>
    %cst_17 = arith.constant dense<0.000000e+00> : vector<2x8xf32>
    %38 = vector.multi_reduction <add>, %37, %cst_17 [2] : vector<2x8x8xf32> to vector<2x8xf32>
    %39 = vector.shape_cast %38 : vector<2x8xf32> to vector<2x8x1xf32>
    %40 = tpu.reciprocal %39 {approx = true} : vector<2x8x1xf32> -> vector<2x8x1xf32>
    %41 = vector.broadcast %40 : vector<2x8x1xf32> to vector<2x8x8xf32>
    %42 = arith.mulf %37, %41 : vector<2x8x8xf32>
    "tpu.trace_start"() <{level = 10 : i32, message = "bqk,bke->bqe"}> : () -> ()
    %cst_18 = arith.constant dense<0.000000e+00> : vector<2x8x8xf32>
    %43 = tpu.matmul %42, %31, %cst_18 {dimension_numbers = #tpu.dot_dimension_numbers<[2], [1], [1], [2], [0, 0, 0, 1, 1, 2], [0], [0]>} : vector<2x8x8xf32>, vector<2x8x8xf32>, vector<2x8x8xf32> -> vector<2x8x8xf32>
    "tpu.trace_stop"() : () -> ()
    %44 = vector.shape_cast %43 : vector<2x8x8xf32> to vector<16x8xf32>
    %c1 = arith.constant 1 : index
    %c0_19 = arith.constant 0 : index
    %c0_20 = arith.constant 0 : index
    %45 = vector.load %arg4[%c1, %c0_19, %c0_20] : memref<4x8x32xf32, #tpu.memory_space<vmem>>, vector<1x8x32xf32>
    %46 = vector.shape_cast %45 : vector<1x8x32xf32> to vector<8x32xf32>
    %cst_21 = arith.constant dense<0.000000e+00> : vector<16x32xf32>
    %47 = tpu.matmul %44, %46, %cst_21 {dimension_numbers = #tpu.dot_dimension_numbers<[1], [0], [0], [1], [0, 0, 1, 1], [], []>} : vector<16x8xf32>, vector<8x32xf32>, vector<16x32xf32> -> vector<16x32xf32>
    %48 = arith.addf %28, %47 : vector<16x32xf32>
    %49 = vector.extract_strided_slice %7 {offsets = [0, 0, 16], sizes = [2, 8, 8], strides = [1, 1, 1]} : vector<2x8x96xf32> to vector<2x8x8xf32>
    %50 = vector.extract_strided_slice %7 {offsets = [0, 0, 48], sizes = [2, 8, 8], strides = [1, 1, 1]} : vector<2x8x96xf32> to vector<2x8x8xf32>
    %51 = vector.extract_strided_slice %7 {offsets = [0, 0, 80], sizes = [2, 8, 8], strides = [1, 1, 1]} : vector<2x8x96xf32> to vector<2x8x8xf32>
    "tpu.trace_start"() <{level = 10 : i32, message = "bqe,bke->bqk"}> : () -> ()
    %cst_22 = arith.constant dense<0.000000e+00> : vector<2x8x8xf32>
    %52 = tpu.matmul %49, %50, %cst_22 {dimension_numbers = #tpu.dot_dimension_numbers<[2], [2], [1], [1], [0, 0, 0, 1, 1, 1], [0], [0]>} : vector<2x8x8xf32>, vector<2x8x8xf32>, vector<2x8x8xf32> -> vector<2x8x8xf32>
    "tpu.trace_stop"() : () -> ()
    %cst_23 = arith.constant dense<0xFF800000> : vector<2x8xf32>
    %53 = vector.multi_reduction <maximumf>, %52, %cst_23 [2] : vector<2x8x8xf32> to vector<2x8xf32>
    %54 = vector.shape_cast %53 : vector<2x8xf32> to vector<2x8x1xf32>
    %55 = vector.broadcast %54 : vector<2x8x1xf32> to vector<2x8x8xf32>
    %56 = arith.subf %52, %55 : vector<2x8x8xf32>
    %57 = math.exp %56 : vector<2x8x8xf32>
    %cst_24 = arith.constant dense<0.000000e+00> : vector<2x8xf32>
    %58 = vector.multi_reduction <add>, %57, %cst_24 [2] : vector<2x8x8xf32> to vector<2x8xf32>
    %59 = vector.shape_cast %58 : vector<2x8xf32> to vector<2x8x1xf32>
    %60 = tpu.reciprocal %59 {approx = true} : vector<2x8x1xf32> -> vector<2x8x1xf32>
    %61 = vector.broadcast %60 : vector<2x8x1xf32> to vector<2x8x8xf32>
    %62 = arith.mulf %57, %61 : vector<2x8x8xf32>
    "tpu.trace_start"() <{level = 10 : i32, message = "bqk,bke->bqe"}> : () -> ()
    %cst_25 = arith.constant dense<0.000000e+00> : vector<2x8x8xf32>
    %63 = tpu.matmul %62, %51, %cst_25 {dimension_numbers = #tpu.dot_dimension_numbers<[2], [1], [1], [2], [0, 0, 0, 1, 1, 2], [0], [0]>} : vector<2x8x8xf32>, vector<2x8x8xf32>, vector<2x8x8xf32> -> vector<2x8x8xf32>
    "tpu.trace_stop"() : () -> ()
    %64 = vector.shape_cast %63 : vector<2x8x8xf32> to vector<16x8xf32>
    %c2 = arith.constant 2 : index
    %c0_26 = arith.constant 0 : index
    %c0_27 = arith.constant 0 : index
    %65 = vector.load %arg4[%c2, %c0_26, %c0_27] : memref<4x8x32xf32, #tpu.memory_space<vmem>>, vector<1x8x32xf32>
    %66 = vector.shape_cast %65 : vector<1x8x32xf32> to vector<8x32xf32>
    %cst_28 = arith.constant dense<0.000000e+00> : vector<16x32xf32>
    %67 = tpu.matmul %64, %66, %cst_28 {dimension_numbers = #tpu.dot_dimension_numbers<[1], [0], [0], [1], [0, 0, 1, 1], [], []>} : vector<16x8xf32>, vector<8x32xf32>, vector<16x32xf32> -> vector<16x32xf32>
    %68 = arith.addf %48, %67 : vector<16x32xf32>
    %69 = vector.extract_strided_slice %7 {offsets = [0, 0, 24], sizes = [2, 8, 8], strides = [1, 1, 1]} : vector<2x8x96xf32> to vector<2x8x8xf32>
    %70 = vector.extract_strided_slice %7 {offsets = [0, 0, 56], sizes = [2, 8, 8], strides = [1, 1, 1]} : vector<2x8x96xf32> to vector<2x8x8xf32>
    %71 = vector.extract_strided_slice %7 {offsets = [0, 0, 88], sizes = [2, 8, 8], strides = [1, 1, 1]} : vector<2x8x96xf32> to vector<2x8x8xf32>
    "tpu.trace_start"() <{level = 10 : i32, message = "bqe,bke->bqk"}> : () -> ()
    %cst_29 = arith.constant dense<0.000000e+00> : vector<2x8x8xf32>
    %72 = tpu.matmul %69, %70, %cst_29 {dimension_numbers = #tpu.dot_dimension_numbers<[2], [2], [1], [1], [0, 0, 0, 1, 1, 1], [0], [0]>} : vector<2x8x8xf32>, vector<2x8x8xf32>, vector<2x8x8xf32> -> vector<2x8x8xf32>
    "tpu.trace_stop"() : () -> ()
    %cst_30 = arith.constant dense<0xFF800000> : vector<2x8xf32>
    %73 = vector.multi_reduction <maximumf>, %72, %cst_30 [2] : vector<2x8x8xf32> to vector<2x8xf32>
    %74 = vector.shape_cast %73 : vector<2x8xf32> to vector<2x8x1xf32>
    %75 = vector.broadcast %74 : vector<2x8x1xf32> to vector<2x8x8xf32>
    %76 = arith.subf %72, %75 : vector<2x8x8xf32>
    %77 = math.exp %76 : vector<2x8x8xf32>
    %cst_31 = arith.constant dense<0.000000e+00> : vector<2x8xf32>
    %78 = vector.multi_reduction <add>, %77, %cst_31 [2] : vector<2x8x8xf32> to vector<2x8xf32>
    %79 = vector.shape_cast %78 : vector<2x8xf32> to vector<2x8x1xf32>
    %80 = tpu.reciprocal %79 {approx = true} : vector<2x8x1xf32> -> vector<2x8x1xf32>
    %81 = vector.broadcast %80 : vector<2x8x1xf32> to vector<2x8x8xf32>
    %82 = arith.mulf %77, %81 : vector<2x8x8xf32>
    "tpu.trace_start"() <{level = 10 : i32, message = "bqk,bke->bqe"}> : () -> ()
    %cst_32 = arith.constant dense<0.000000e+00> : vector<2x8x8xf32>
    %83 = tpu.matmul %82, %71, %cst_32 {dimension_numbers = #tpu.dot_dimension_numbers<[2], [1], [1], [2], [0, 0, 0, 1, 1, 2], [0], [0]>} : vector<2x8x8xf32>, vector<2x8x8xf32>, vector<2x8x8xf32> -> vector<2x8x8xf32>
    "tpu.trace_stop"() : () -> ()
    %84 = vector.shape_cast %83 : vector<2x8x8xf32> to vector<16x8xf32>
    %c3 = arith.constant 3 : index
    %c0_33 = arith.constant 0 : index
    %c0_34 = arith.constant 0 : index
    %85 = vector.load %arg4[%c3, %c0_33, %c0_34] : memref<4x8x32xf32, #tpu.memory_space<vmem>>, vector<1x8x32xf32>
    %86 = vector.shape_cast %85 : vector<1x8x32xf32> to vector<8x32xf32>
    %cst_35 = arith.constant dense<0.000000e+00> : vector<16x32xf32>
    %87 = tpu.matmul %84, %86, %cst_35 {dimension_numbers = #tpu.dot_dimension_numbers<[1], [0], [0], [1], [0, 0, 1, 1], [], []>} : vector<16x8xf32>, vector<8x32xf32>, vector<16x32xf32> -> vector<16x32xf32>
    %88 = arith.addf %68, %87 : vector<16x32xf32>
    %c0_36 = arith.constant 0 : index
    %c0_37 = arith.constant 0 : index
    %89 = vector.load %arg5[%c0_36, %c0_37] : memref<1x32xf32, #tpu.memory_space<vmem>>, vector<1x32xf32>
    %90 = vector.broadcast %89 : vector<1x32xf32> to vector<16x32xf32>
    %91 = arith.addf %88, %90 : vector<16x32xf32>
    %92 = vector.shape_cast %91 : vector<16x32xf32> to vector<2x8x32xf32>
    %93 = arith.addf %0, %92 : vector<2x8x32xf32>
    %c0_38 = arith.constant 0 : index
    %c0_39 = arith.constant 0 : index
    %c0_40 = arith.constant 0 : index
    %94 = vector.load %arg6[%c0_38, %c0_39, %c0_40] : memref<2x8x32xf32, #tpu.memory_space<vmem>>, vector<2x8x32xf32>
    tpu.vector_store %arg6[%c0_38, %c0_39, %c0_40], %93 {strides = array<i32>} : memref<2x8x32xf32, #tpu.memory_space<vmem>>, vector<2x8x32xf32>,
    return
  }
  func.func @transform_0(%arg0: i32) -> (i32, i32, i32) {
    %c0_i32 = arith.constant 0 : i32
    %c0_i32_0 = arith.constant 0 : i32
    %c0_i32_1 = arith.constant 0 : i32
    return %arg0, %c0_i32, %c0_i32_0 : i32, i32, i32
  }
  func.func @transform_1(%arg0: i32) -> (i32, i32) {
    %c0_i32 = arith.constant 0 : i32
    %c0_i32_0 = arith.constant 0 : i32
    %c0_i32_1 = arith.constant 0 : i32
    return %c0_i32, %c0_i32_0 : i32, i32
  }
  func.func @transform_2(%arg0: i32) -> (i32, i32) {
    %c0_i32 = arith.constant 0 : i32
    %c0_i32_0 = arith.constant 0 : i32
    %c0_i32_1 = arith.constant 0 : i32
    return %c0_i32, %c0_i32_0 : i32, i32
  }
  func.func @transform_3(%arg0: i32) -> (i32, i32, i32) {
    %c0_i32 = arith.constant 0 : i32
    %c0_i32_0 = arith.constant 0 : i32
    %c0_i32_1 = arith.constant 0 : i32
    %c0_i32_2 = arith.constant 0 : i32
    return %c0_i32, %c0_i32_0, %c0_i32_1 : i32, i32, i32
  }
  func.func @transform_4(%arg0: i32) -> (i32, i32) {
    %c0_i32 = arith.constant 0 : i32
    %c0_i32_0 = arith.constant 0 : i32
    %c0_i32_1 = arith.constant 0 : i32
    return %c0_i32, %c0_i32_0 : i32, i32
  }
  func.func @transform_5(%arg0: i32) -> (i32, i32, i32) {
    %c0_i32 = arith.constant 0 : i32
    %c0_i32_0 = arith.constant 0 : i32
    %c0_i32_1 = arith.constant 0 : i32
    return %arg0, %c0_i32, %c0_i32_0 : i32, i32, i32
  }
}

</mosaic_0001>

<llo_original>
// kernel: tpu_custom_call.1
$region0: #{tpu_custom_call.1}
  #allocation0 [shape = 'u32[]', space=smem, size = 0x4, offset = 0x4, fixed_abs, tag = 'smem constant byte address 0x4 - core index']
  #allocation1 [shape = 'u32[144,128]{1,0:T(1,128)}', space=vmem, size = 0x12000, scoped, tag = 'internal scratch']
  %s0 = inlined_call_operand.hbm [shape: f32[2,8,32], index: 0, kind: input, shape index: {}]
  %s1 = inlined_call_operand.hbm [shape: f32[32,96], index: 1, kind: input, shape index: {}]
  %s2 = inlined_call_operand.vmem [shape: f32[1,96], index: 2, kind: input, shape index: {}]
  %s3 = inlined_call_operand.hbm [shape: f32[4,8,32], index: 3, kind: input, shape index: {}]
  %s4 = inlined_call_operand.vmem [shape: f32[1,32], index: 4, kind: input, shape index: {}]
  %s5 = inlined_call_operand.hbm [shape: f32[2,8,32], index: 5, kind: output, shape index: {}]
  %s6 = sld [smem:[#allocation0]]
  $region42: #{tpu_custom_call.1} parent=0
    _
  %s8 = ssub.s32 1, %s6
  %s9 = scalar_select 0, %s8, %s6
  $region1: #{tpu_custom_call.1} parent=0
    #allocation2 [shape = 'u8[8192]{0}', space=vmem, size = 0x2000, scoped, tag = 'input window, operand 0, single buffered']
    #allocation3 [shape = 's32[1]{0}', space=sflag, size = 0x4, scoped, tag = 'scoped memory for tpu_custom_call.1']
    #allocation4 [shape = 's32[1]{0}', space=sflag, size = 0x4, scoped, tag = 'scoped memory for tpu_custom_call.1']
    #allocation5 [shape = 'u8[16384]{0}', space=vmem, size = 0x4000, scoped, tag = 'input window, operand 1, single buffered']
    #allocation6 [shape = 's32[1]{0}', space=sflag, size = 0x4, scoped, tag = 'scoped memory for tpu_custom_call.1']
    #allocation7 [shape = 'u8[16384]{0}', space=vmem, size = 0x4000, scoped, tag = 'input window, operand 3, single buffered']
    #allocation8 [shape = 'u8[8192]{0}', space=vmem, size = 0x2000, scoped, tag = 'output window, operand 0, single buffered']
    %10 = vsyncpa [#allocation3], 0
    %11 = vsyncpa [#allocation6], 0
    %12 = vsyncpa [#allocation4], 0
    // Predicated region
    $region2: #{tpu_custom_call.1} parent=1 // pred_check
      _
    $region3: #{tpu_custom_call.1} parent=1 // pred_check_branch
      %14 = sbr.rel (0) target = $region5
    $region4: #{tpu_custom_call.1} parent=1 // pred_region
      %s16 = ssub.s32 256, 256
      %17 = vsyncadd [#allocation3], %s16
      %s18 = sshll.u32 [#allocation2], 4
      %s19 = int_to_ptr.vmem [resolvable:$true] %s18
      %24 = dma.hbm_to_vmem [thread:$0]  %s0, 256, %s19, [#allocation3], 128, 128, 8
    $region5: #{tpu_custom_call.1} parent=1 // pred_fallthru
      _
    // Predicated region
    $region6: #{tpu_custom_call.1} parent=1 // pred_check
      _
    $region7: #{tpu_custom_call.1} parent=1 // pred_check_branch
      %26 = sbr.rel (0) target = $region9
    $region8: #{tpu_custom_call.1} parent=1 // pred_region
      %s28 = ssub.s32 512, 512
      %29 = vsyncadd [#allocation6], %s28
      %s30 = sshll.u32 [#allocation5], 4
      %s31 = int_to_ptr.vmem [resolvable:$true] %s30
      %36 = dma.hbm_to_vmem [thread:$0]  %s1, 512, %s31, [#allocation6], 128, 128, 8
    $region9: #{tpu_custom_call.1} parent=1 // pred_fallthru
      _
    // Predicated region
    $region10: #{tpu_custom_call.1} parent=1 // pred_check
      _
    $region11: #{tpu_custom_call.1} parent=1 // pred_check_branch
      %38 = sbr.rel (0) target = $region13
    $region12: #{tpu_custom_call.1} parent=1 // pred_region
      _
    $region13: #{tpu_custom_call.1} parent=1 // pred_fallthru
      _
    // Predicated region
    $region14: #{tpu_custom_call.1} parent=1 // pred_check
      _
    $region15: #{tpu_custom_call.1} parent=1 // pred_check_branch
      %40 = sbr.rel (0) target = $region17
    $region16: #{tpu_custom_call.1} parent=1 // pred_region
      %s42 = ssub.s32 512, 512
      %43 = vsyncadd [#allocation6], %s42
      %s44 = sshll.u32 [#allocation7], 4
      %s45 = int_to_ptr.vmem [resolvable:$true] %s44
      %50 = dma.hbm_to_vmem [thread:$0]  %s3, 512, %s45, [#allocation6], 128, 128, 8
    $region17: #{tpu_custom_call.1} parent=1 // pred_fallthru
      _
    // Predicated region
    $region18: #{tpu_custom_call.1} parent=1 // pred_check
      _
    $region19: #{tpu_custom_call.1} parent=1 // pred_check_branch
      %52 = sbr.rel (0) target = $region21
    $region20: #{tpu_custom_call.1} parent=1 // pred_region
      _
    $region21: #{tpu_custom_call.1} parent=1 // pred_fallthru
      _
    // Predicated region
    $region22: #{tpu_custom_call.1} parent=1 // pred_check
      _
    $region23: #{tpu_custom_call.1} parent=1 // pred_check_branch
      %54 = sbr.rel (0) target = $region25
    $region24: #{tpu_custom_call.1} parent=1 // pred_region
      %55 = dma.done [#allocation3], 256
    $region25: #{tpu_custom_call.1} parent=1 // pred_fallthru
      _
    // Predicated region
    $region26: #{tpu_custom_call.1} parent=1 // pred_check
      _
    $region27: #{tpu_custom_call.1} parent=1 // pred_check_branch
      %57 = sbr.rel (0) target = $region29
    $region28: #{tpu_custom_call.1} parent=1 // pred_region
      %58 = dma.done [#allocation6], 512
    $region29: #{tpu_custom_call.1} parent=1 // pred_fallthru
      _
    // Predicated region
    $region30: #{tpu_custom_call.1} parent=1 // pred_check
      _
    $region31: #{tpu_custom_call.1} parent=1 // pred_check_branch
      %60 = sbr.rel (0) target = $region33
    $region32: #{tpu_custom_call.1} parent=1 // pred_region
      %61 = dma.done [#allocation6], 512
    $region33: #{tpu_custom_call.1} parent=1 // pred_fallthru
      _
    %v62 = vld [vmem:[#allocation2] sm:$0xff]
    %v63 = vld [vmem:[#allocation2 + $0x8] sm:$0xff]
    %v64 = vld [vmem:[#allocation5] sm:$0xff]
    %v65 = vld [vmem:[#allocation5 + $0x8] sm:$0xff]
    %v66 = vld [vmem:[#allocation5 + $0x10] sm:$0xff]
    %v67 = vld [vmem:[#allocation5 + $0x18] sm:$0xff]
    %v68 = vld [vmem:[%s2] sm:$0x1]
    %v70 = vlaneseq
    %v71 = vshrl.u32 %v70, 7
    %v72 = vsub.s32 0, %v71
    %v73 = vrot.slane %v68, %v72
    %vm75 = vcmask 261120
    %v77 = vsel %vm75, %v62, 0
    %v80 = vsel %vm75, %v63, 0
    %82 = vmatprep.subr.mxu0 0.0
    %83 = vmatpush1.msra.mxu0 %v64
    %84 = vmatprep.subr.mxu0 0.0
    %85 = vmatpush1.msra.mxu0 %v65
    %86 = vmatprep.subr.mxu0 0.0
    %87 = vmatpush1.msra.mxu0 %v66
    %88 = vmatprep.subr.mxu0 0.0
    %89 = vmatpush1.msra.mxu0 %v67
    %90 = vmatprep.subr.mxu0 0.0
    %91 = vmatpush1.msra.mxu0 0.0
    %92 = vmatprep.subr.mxu0 0.0
    %93 = vmatpush1.msra.mxu0 0.0
    %94 = vmatprep.subr.mxu0 0.0
    %95 = vmatpush1.msra.mxu0 0.0
    %96 = vmatprep.subr.mxu0 0.0
    %97 = vmatpush1.msra.mxu0 0.0
    %98 = vmatprep.subr.mxu0 0.0
    %99 = vmatpush1.msra.mxu0 0.0
    %100 = vmatprep.subr.mxu0 0.0
    %101 = vmatpush1.msra.mxu0 0.0
    %102 = vmatprep.subr.mxu0 0.0
    %103 = vmatpush1.msra.mxu0 0.0
    %104 = vmatprep.subr.mxu0 0.0
    %105 = vmatpush1.msra.mxu0 0.0
    %106 = vmatprep.subr.mxu0 0.0
    %107 = vmatpush1.msra.mxu0 0.0
    %108 = vmatprep.subr.mxu0 0.0
    %109 = vmatpush1.msra.mxu0 0.0
    %110 = vmatprep.subr.mxu0 0.0
    %111 = vmatpush1.msra.mxu0 0.0
    %112 = vmatprep.subr.mxu0 0.0
    %113 = vmatpush1.msra.mxu0 0.0
    %114 = vmatprep.subr.mxu0 0.0
    %115 = vmatpush1.msra.mxu0 0.0
    %116 = vmatprep.subr.mxu0 0.0
    %117 = vmatpush1.msra.mxu0 0.0
    %118 = vmatprep.subr.mxu0 0.0
    %119 = vmatpush1.msra.mxu0 0.0
    %120 = vmatprep.subr.mxu0 0.0
    %121 = vmatpush1.msra.mxu0 0.0
    %122 = vmatprep.subr.mxu0 0.0
    %123 = vmatpush1.msra.mxu0 0.0
    %124 = vmatprep.subr.mxu0 0.0
    %125 = vmatpush1.msra.mxu0 0.0
    %126 = vmatprep.subr.mxu0 0.0
    %127 = vmatpush1.msra.mxu0 0.0
    %128 = vmatprep.subr.mxu0 0.0
    %129 = vmatpush1.msra.mxu0 0.0
    %130 = vmatprep.subr.mxu0 0.0
    %131 = vmatpush1.msra.mxu0 0.0
    %132 = vmatprep.subr.mxu0 0.0
    %133 = vmatpush1.msra.mxu0 0.0
    %134 = vmatprep.subr.mxu0 0.0
    %135 = vmatpush1.msra.mxu0 0.0
    %136 = vmatprep.subr.mxu0 0.0
    %137 = vmatpush1.msra.mxu0 0.0
    %138 = vmatprep.subr.mxu0 0.0
    %139 = vmatpush1.msra.mxu0 0.0
    %140 = vmatprep.subr.mxu0 0.0
    %141 = vmatpush1.msra.mxu0 0.0
    %142 = vmatprep.subr.mxu0 0.0
    %143 = vmatpush1.msra.mxu0 0.0
    %144 = vmatprep.subr.mxu0 0.0
    %145 = vmatpush1.msra.mxu0 0.0
    %146 = vmatprep.mubr.f32.mxu0 0.0
    %147 = vmatmul.mubr.f32.gmra.mrb[0].mxu0 %v77
    %v148 = vpop.f32.mrb[0].mxu0
    %v149 = vadd.f32 %v73, %v148
    %v150 = vpop.f32.mrb[0].mxu0
    %151 = vmatprep.mubr.f32.mxu0 0.0
    %152 = vmatmul.mubr.f32.gmra.mrb[0].mxu0 %v80
    %v153 = vpop.f32.mrb[0].mxu0
    %v154 = vadd.f32 %v73, %v153
    %v155 = vpop.f32.mrb[0].mxu0
    %156 = vdwg.mxu0
    %158 = vrot.lane.b32.xlu0 %v149, 96
    %v159 = vpop.permute.xlu0 %158
    %vm160 = vcmask 64512
    %v161 = vsel %vm160, %v149, 0
    %v163 = vsel %vm160, %v159, 0
    %165 = vmatprep.subr.mxu0 0.0
    %166 = vmatpush1.xpose.msra.mxu0 %v163
    %167 = vmatprep.subr.mxu0 0.0
    %168 = vmatpush1.xpose.msra.mxu0 0.0
    %169 = vmatprep.subr.mxu0 0.0
    %170 = vmatpush1.xpose.msra.mxu0 0.0
    %171 = vmatprep.subr.mxu0 0.0
    %172 = vmatpush1.xpose.msra.mxu0 0.0
    %173 = vmatprep.subr.mxu0 0.0
    %174 = vmatpush1.xpose.msra.mxu0 0.0
    %175 = vmatprep.subr.mxu0 0.0
    %176 = vmatpush1.xpose.msra.mxu0 0.0
    %177 = vmatprep.subr.mxu0 0.0
    %178 = vmatpush1.xpose.msra.mxu0 0.0
    %179 = vmatprep.subr.mxu0 0.0
    %180 = vmatpush1.xpose.msra.mxu0 0.0
    %181 = vmatprep.subr.mxu0 0.0
    %182 = vmatpush1.xpose.msra.mxu0 0.0
    %183 = vmatprep.subr.mxu0 0.0
    %184 = vmatpush1.xpose.msra.mxu0 0.0
    %185 = vmatprep.subr.mxu0 0.0
    %186 = vmatpush1.xpose.msra.mxu0 0.0
    %187 = vmatprep.subr.mxu0 0.0
    %188 = vmatpush1.xpose.msra.mxu0 0.0
    %189 = vmatprep.subr.mxu0 0.0
    %190 = vmatpush1.xpose.msra.mxu0 0.0
    %191 = vmatprep.subr.mxu0 0.0
    %192 = vmatpush1.xpose.msra.mxu0 0.0
    %193 = vmatprep.subr.mxu0 0.0
    %194 = vmatpush1.xpose.msra.mxu0 0.0
    %195 = vmatprep.subr.mxu0 0.0
    %196 = vmatpush1.xpose.msra.mxu0 0.0
    %197 = vmatprep.subr.mxu0 0.0
    %198 = vmatpush1.xpose.msra.mxu0 0.0
    %199 = vmatprep.subr.mxu0 0.0
    %200 = vmatpush1.xpose.msra.mxu0 0.0
    %201 = vmatprep.subr.mxu0 0.0
    %202 = vmatpush1.xpose.msra.mxu0 0.0
    %203 = vmatprep.subr.mxu0 0.0
    %204 = vmatpush1.xpose.msra.mxu0 0.0
    %205 = vmatprep.subr.mxu0 0.0
    %206 = vmatpush1.xpose.msra.mxu0 0.0
    %207 = vmatprep.subr.mxu0 0.0
    %208 = vmatpush1.xpose.msra.mxu0 0.0
    %209 = vmatprep.subr.mxu0 0.0
    %210 = vmatpush1.xpose.msra.mxu0 0.0
    %211 = vmatprep.subr.mxu0 0.0
    %212 = vmatpush1.xpose.msra.mxu0 0.0
    %213 = vmatprep.subr.mxu0 0.0
    %214 = vmatpush1.xpose.msra.mxu0 0.0
    %215 = vmatprep.subr.mxu0 0.0
    %216 = vmatpush1.xpose.msra.mxu0 0.0
    %217 = vmatprep.subr.mxu0 0.0
    %218 = vmatpush1.xpose.msra.mxu0 0.0
    %219 = vmatprep.subr.mxu0 0.0
    %220 = vmatpush1.xpose.msra.mxu0 0.0
    %221 = vmatprep.subr.mxu0 0.0
    %222 = vmatpush1.xpose.msra.mxu0 0.0
    %223 = vmatprep.subr.mxu0 0.0
    %224 = vmatpush1.xpose.msra.mxu0 0.0
    %225 = vmatprep.subr.mxu0 0.0
    %226 = vmatpush1.xpose.msra.mxu0 0.0
    %227 = vmatprep.subr.mxu0 0.0
    %228 = vmatpush1.xpose.msra.mxu0 0.0
    %229 = vmatprep.mubr.f32.mxu0 0.0
    %230 = vmatmul.mubr.f32.gmra.mrb[0].mxu0 %v161
    %v231 = vpop.f32.mrb[0].mxu0
    %v232 = vadd.f32 0.0, %v231
    %v233 = vpop.f32.mrb[0].mxu0
    %234 = vdwg.mxu0
    %236 = vrot.lane.b32.xlu0 %v154, 96
    %v237 = vpop.permute.xlu0 %236
    %v238 = vsel %vm160, %v154, 0
    %v240 = vsel %vm160, %v237, 0
    %242 = vmatprep.subr.mxu0 0.0
    %243 = vmatpush1.xpose.msra.mxu0 %v240
    %244 = vmatprep.subr.mxu0 0.0
    %245 = vmatpush1.xpose.msra.mxu0 0.0
    %246 = vmatprep.subr.mxu0 0.0
    %247 = vmatpush1.xpose.msra.mxu0 0.0
    %248 = vmatprep.subr.mxu0 0.0
    %249 = vmatpush1.xpose.msra.mxu0 0.0
    %250 = vmatprep.subr.mxu0 0.0
    %251 = vmatpush1.xpose.msra.mxu0 0.0
    %252 = vmatprep.subr.mxu0 0.0
    %253 = vmatpush1.xpose.msra.mxu0 0.0
    %254 = vmatprep.subr.mxu0 0.0
    %255 = vmatpush1.xpose.msra.mxu0 0.0
    %256 = vmatprep.subr.mxu0 0.0
    %257 = vmatpush1.xpose.msra.mxu0 0.0
    %258 = vmatprep.subr.mxu0 0.0
    %259 = vmatpush1.xpose.msra.mxu0 0.0
    %260 = vmatprep.subr.mxu0 0.0
    %261 = vmatpush1.xpose.msra.mxu0 0.0
    %262 = vmatprep.subr.mxu0 0.0
    %263 = vmatpush1.xpose.msra.mxu0 0.0
    %264 = vmatprep.subr.mxu0 0.0
    %265 = vmatpush1.xpose.msra.mxu0 0.0
    %266 = vmatprep.subr.mxu0 0.0
    %267 = vmatpush1.xpose.msra.mxu0 0.0
    %268 = vmatprep.subr.mxu0 0.0
    %269 = vmatpush1.xpose.msra.mxu0 0.0
    %270 = vmatprep.subr.mxu0 0.0
    %271 = vmatpush1.xpose.msra.mxu0 0.0
    %272 = vmatprep.subr.mxu0 0.0
    %273 = vmatpush1.xpose.msra.mxu0 0.0
    %274 = vmatprep.subr.mxu0 0.0
    %275 = vmatpush1.xpose.msra.mxu0 0.0
    %276 = vmatprep.subr.mxu0 0.0
    %277 = vmatpush1.xpose.msra.mxu0 0.0
    %278 = vmatprep.subr.mxu0 0.0
    %279 = vmatpush1.xpose.msra.mxu0 0.0
    %280 = vmatprep.subr.mxu0 0.0
    %281 = vmatpush1.xpose.msra.mxu0 0.0
    %282 = vmatprep.subr.mxu0 0.0
    %283 = vmatpush1.xpose.msra.mxu0 0.0
    %284 = vmatprep.subr.mxu0 0.0
    %285 = vmatpush1.xpose.msra.mxu0 0.0
    %286 = vmatprep.subr.mxu0 0.0
    %287 = vmatpush1.xpose.msra.mxu0 0.0
    %288 = vmatprep.subr.mxu0 0.0
    %289 = vmatpush1.xpose.msra.mxu0 0.0
    %290 = vmatprep.subr.mxu0 0.0
    %291 = vmatpush1.xpose.msra.mxu0 0.0
    %292 = vmatprep.subr.mxu0 0.0
    %293 = vmatpush1.xpose.msra.mxu0 0.0
    %294 = vmatprep.subr.mxu0 0.0
    %295 = vmatpush1.xpose.msra.mxu0 0.0
    %296 = vmatprep.subr.mxu0 0.0
    %297 = vmatpush1.xpose.msra.mxu0 0.0
    %298 = vmatprep.subr.mxu0 0.0
    %299 = vmatpush1.xpose.msra.mxu0 0.0
    %300 = vmatprep.subr.mxu0 0.0
    %301 = vmatpush1.xpose.msra.mxu0 0.0
    %302 = vmatprep.subr.mxu0 0.0
    %303 = vmatpush1.xpose.msra.mxu0 0.0
    %304 = vmatprep.subr.mxu0 0.0
    %305 = vmatpush1.xpose.msra.mxu0 0.0
    %306 = vmatprep.mubr.f32.mxu0 0.0
    %307 = vmatmul.mubr.f32.gmra.mrb[0].mxu0 %v238
    %v308 = vpop.f32.mrb[0].mxu0
    %v309 = vadd.f32 0.0, %v308
    %v310 = vpop.f32.mrb[0].mxu0
    %311 = vdwg.mxu0
    %v312 = vsel %vm160, %v232, -inf
    %313 = vmax.xlane.f32.xlu0 %v312
    %v314 = vpop.xlane.xlu0 %313
    %v315 = vsel %vm160, %v309, -inf
    %316 = vmax.xlane.f32.xlu0 %v315
    %v317 = vpop.xlane.xlu0 %316
    %v318 = vsub.f32 %v232, %v314
    %v319 = vsub.f32 %v309, %v317
    %v320 = vmul.f32 %v318, 1.442695
    %v321 = vpow.pop %v320
    %v322 = vmul.f32 %v319, 1.442695
    %v323 = vpow.pop %v322
    %v324 = vsel %vm160, %v321, 0.0
    %325 = vadd.xlane.f32.xlu0 %v324
    %v326 = vpop.xlane.xlu0 %325
    %v327 = vsel %vm160, %v323, 0.0
    %328 = vadd.xlane.f32.xlu0 %v327
    %v329 = vpop.xlane.xlu0 %328
    %v330 = vrcp.pop %v326
    %v331 = vrcp.pop %v329
    %v332 = vmul.f32 %v321, %v330
    %v333 = vmul.f32 %v323, %v331
    %334 = vrot.lane.b32.xlu0 %v149, 64
    %v335 = vpop.permute.xlu0 %334
    %v338 = vsel %vm160, %v332, 0
    %340 = vmatprep.subr.mxu0 0.0
    %341 = vmatpush1.msra.mxu0 %v335
    %342 = vmatprep.subr.mxu0 0.0
    %343 = vmatpush1.msra.mxu0 0.0
    %344 = vmatprep.subr.mxu0 0.0
    %345 = vmatpush1.msra.mxu0 0.0
    %346 = vmatprep.subr.mxu0 0.0
    %347 = vmatpush1.msra.mxu0 0.0
    %348 = vmatprep.subr.mxu0 0.0
    %349 = vmatpush1.msra.mxu0 0.0
    %350 = vmatprep.subr.mxu0 0.0
    %351 = vmatpush1.msra.mxu0 0.0
    %352 = vmatprep.subr.mxu0 0.0
    %353 = vmatpush1.msra.mxu0 0.0
    %354 = vmatprep.subr.mxu0 0.0
    %355 = vmatpush1.msra.mxu0 0.0
    %356 = vmatprep.subr.mxu0 0.0
    %357 = vmatpush1.msra.mxu0 0.0
    %358 = vmatprep.subr.mxu0 0.0
    %359 = vmatpush1.msra.mxu0 0.0
    %360 = vmatprep.subr.mxu0 0.0
    %361 = vmatpush1.msra.mxu0 0.0
    %362 = vmatprep.subr.mxu0 0.0
    %363 = vmatpush1.msra.mxu0 0.0
    %364 = vmatprep.subr.mxu0 0.0
    %365 = vmatpush1.msra.mxu0 0.0
    %366 = vmatprep.subr.mxu0 0.0
    %367 = vmatpush1.msra.mxu0 0.0
    %368 = vmatprep.subr.mxu0 0.0
    %369 = vmatpush1.msra.mxu0 0.0
    %370 = vmatprep.subr.mxu0 0.0
    %371 = vmatpush1.msra.mxu0 0.0
    %372 = vmatprep.subr.mxu0 0.0
    %373 = vmatpush1.msra.mxu0 0.0
    %374 = vmatprep.subr.mxu0 0.0
    %375 = vmatpush1.msra.mxu0 0.0
    %376 = vmatprep.subr.mxu0 0.0
    %377 = vmatpush1.msra.mxu0 0.0
    %378 = vmatprep.subr.mxu0 0.0
    %379 = vmatpush1.msra.mxu0 0.0
    %380 = vmatprep.subr.mxu0 0.0
    %381 = vmatpush1.msra.mxu0 0.0
    %382 = vmatprep.subr.mxu0 0.0
    %383 = vmatpush1.msra.mxu0 0.0
    %384 = vmatprep.subr.mxu0 0.0
    %385 = vmatpush1.msra.mxu0 0.0
    %386 = vmatprep.subr.mxu0 0.0
    %387 = vmatpush1.msra.mxu0 0.0
    %388 = vmatprep.subr.mxu0 0.0
    %389 = vmatpush1.msra.mxu0 0.0
    %390 = vmatprep.subr.mxu0 0.0
    %391 = vmatpush1.msra.mxu0 0.0
    %392 = vmatprep.subr.mxu0 0.0
    %393 = vmatpush1.msra.mxu0 0.0
    %394 = vmatprep.subr.mxu0 0.0
    %395 = vmatpush1.msra.mxu0 0.0
    %396 = vmatprep.subr.mxu0 0.0
    %397 = vmatpush1.msra.mxu0 0.0
    %398 = vmatprep.subr.mxu0 0.0
    %399 = vmatpush1.msra.mxu0 0.0
    %400 = vmatprep.subr.mxu0 0.0
    %401 = vmatpush1.msra.mxu0 0.0
    %402 = vmatprep.subr.mxu0 0.0
    %403 = vmatpush1.msra.mxu0 0.0
    %404 = vmatprep.mubr.f32.mxu0 0.0
    %405 = vmatmul.mubr.f32.gmra.mrb[0].mxu0 %v338
    %v406 = vpop.f32.mrb[0].mxu0
    %v407 = vadd.f32 0.0, %v406
    %v408 = vpop.f32.mrb[0].mxu0
    %409 = vdwg.mxu0
    %410 = vrot.lane.b32.xlu0 %v154, 64
    %v411 = vpop.permute.xlu0 %410
    %v414 = vsel %vm160, %v333, 0
    %416 = vmatprep.subr.mxu0 0.0
    %417 = vmatpush1.msra.mxu0 %v411
    %418 = vmatprep.subr.mxu0 0.0
    %419 = vmatpush1.msra.mxu0 0.0
    %420 = vmatprep.subr.mxu0 0.0
    %421 = vmatpush1.msra.mxu0 0.0
    %422 = vmatprep.subr.mxu0 0.0
    %423 = vmatpush1.msra.mxu0 0.0
    %424 = vmatprep.subr.mxu0 0.0
    %425 = vmatpush1.msra.mxu0 0.0
    %426 = vmatprep.subr.mxu0 0.0
    %427 = vmatpush1.msra.mxu0 0.0
    %428 = vmatprep.subr.mxu0 0.0
    %429 = vmatpush1.msra.mxu0 0.0
    %430 = vmatprep.subr.mxu0 0.0
    %431 = vmatpush1.msra.mxu0 0.0
    %432 = vmatprep.subr.mxu0 0.0
    %433 = vmatpush1.msra.mxu0 0.0
    %434 = vmatprep.subr.mxu0 0.0
    %435 = vmatpush1.msra.mxu0 0.0
    %436 = vmatprep.subr.mxu0 0.0
    %437 = vmatpush1.msra.mxu0 0.0
    %438 = vmatprep.subr.mxu0 0.0
    %439 = vmatpush1.msra.mxu0 0.0
    %440 = vmatprep.subr.mxu0 0.0
    %441 = vmatpush1.msra.mxu0 0.0
    %442 = vmatprep.subr.mxu0 0.0
    %443 = vmatpush1.msra.mxu0 0.0
    %444 = vmatprep.subr.mxu0 0.0
    %445 = vmatpush1.msra.mxu0 0.0
    %446 = vmatprep.subr.mxu0 0.0
    %447 = vmatpush1.msra.mxu0 0.0
    %448 = vmatprep.subr.mxu0 0.0
    %449 = vmatpush1.msra.mxu0 0.0
    %450 = vmatprep.subr.mxu0 0.0
    %451 = vmatpush1.msra.mxu0 0.0
    %452 = vmatprep.subr.mxu0 0.0
    %453 = vmatpush1.msra.mxu0 0.0
    %454 = vmatprep.subr.mxu0 0.0
    %455 = vmatpush1.msra.mxu0 0.0
    %456 = vmatprep.subr.mxu0 0.0
    %457 = vmatpush1.msra.mxu0 0.0
    %458 = vmatprep.subr.mxu0 0.0
    %459 = vmatpush1.msra.mxu0 0.0
    %460 = vmatprep.subr.mxu0 0.0
    %461 = vmatpush1.msra.mxu0 0.0
    %462 = vmatprep.subr.mxu0 0.0
    %463 = vmatpush1.msra.mxu0 0.0
    %464 = vmatprep.subr.mxu0 0.0
    %465 = vmatpush1.msra.mxu0 0.0
    %466 = vmatprep.subr.mxu0 0.0
    %467 = vmatpush1.msra.mxu0 0.0
    %468 = vmatprep.subr.mxu0 0.0
    %469 = vmatpush1.msra.mxu0 0.0
    %470 = vmatprep.subr.mxu0 0.0
    %471 = vmatpush1.msra.mxu0 0.0
    %472 = vmatprep.subr.mxu0 0.0
    %473 = vmatpush1.msra.mxu0 0.0
    %474 = vmatprep.subr.mxu0 0.0
    %475 = vmatpush1.msra.mxu0 0.0
    %476 = vmatprep.subr.mxu0 0.0
    %477 = vmatpush1.msra.mxu0 0.0
    %478 = vmatprep.subr.mxu0 0.0
    %479 = vmatpush1.msra.mxu0 0.0
    %480 = vmatprep.mubr.f32.mxu0 0.0
    %481 = vmatmul.mubr.f32.gmra.mrb[0].mxu0 %v414
    %v482 = vpop.f32.mrb[0].mxu0
    %v483 = vadd.f32 0.0, %v482
    %v484 = vpop.f32.mrb[0].mxu0
    %485 = vdwg.mxu0
    %v486 = vld [vmem:[#allocation7] sm:$0xff]
    %487 = vrot.lane.b32.xlu0 %v149, 120
    %v488 = vpop.permute.xlu0 %487
    %489 = vrot.lane.b32.xlu0 %v149, 88
    %v490 = vpop.permute.xlu0 %489
    %v491 = vsel %vm160, %v488, 0
    %v493 = vsel %vm160, %v490, 0
    %495 = vmatprep.subr.mxu0 0.0
    %496 = vmatpush1.xpose.msra.mxu0 %v493
    %497 = vmatprep.subr.mxu0 0.0
    %498 = vmatpush1.xpose.msra.mxu0 0.0
    %499 = vmatprep.subr.mxu0 0.0
    %500 = vmatpush1.xpose.msra.mxu0 0.0
    %501 = vmatprep.subr.mxu0 0.0
    %502 = vmatpush1.xpose.msra.mxu0 0.0
    %503 = vmatprep.subr.mxu0 0.0
    %504 = vmatpush1.xpose.msra.mxu0 0.0
    %505 = vmatprep.subr.mxu0 0.0
    %506 = vmatpush1.xpose.msra.mxu0 0.0
    %507 = vmatprep.subr.mxu0 0.0
    %508 = vmatpush1.xpose.msra.mxu0 0.0
    %509 = vmatprep.subr.mxu0 0.0
    %510 = vmatpush1.xpose.msra.mxu0 0.0
    %511 = vmatprep.subr.mxu0 0.0
    %512 = vmatpush1.xpose.msra.mxu0 0.0
    %513 = vmatprep.subr.mxu0 0.0
    %514 = vmatpush1.xpose.msra.mxu0 0.0
    %515 = vmatprep.subr.mxu0 0.0
    %516 = vmatpush1.xpose.msra.mxu0 0.0
    %517 = vmatprep.subr.mxu0 0.0
    %518 = vmatpush1.xpose.msra.mxu0 0.0
    %519 = vmatprep.subr.mxu0 0.0
    %520 = vmatpush1.xpose.msra.mxu0 0.0
    %521 = vmatprep.subr.mxu0 0.0
    %522 = vmatpush1.xpose.msra.mxu0 0.0
    %523 = vmatprep.subr.mxu0 0.0
    %524 = vmatpush1.xpose.msra.mxu0 0.0
    %525 = vmatprep.subr.mxu0 0.0
    %526 = vmatpush1.xpose.msra.mxu0 0.0
    %527 = vmatprep.subr.mxu0 0.0
    %528 = vmatpush1.xpose.msra.mxu0 0.0
    %529 = vmatprep.subr.mxu0 0.0
    %530 = vmatpush1.xpose.msra.mxu0 0.0
    %531 = vmatprep.subr.mxu0 0.0
    %532 = vmatpush1.xpose.msra.mxu0 0.0
    %533 = vmatprep.subr.mxu0 0.0
    %534 = vmatpush1.xpose.msra.mxu0 0.0
    %535 = vmatprep.subr.mxu0 0.0
    %536 = vmatpush1.xpose.msra.mxu0 0.0
    %537 = vmatprep.subr.mxu0 0.0
    %538 = vmatpush1.xpose.msra.mxu0 0.0
    %539 = vmatprep.subr.mxu0 0.0
    %540 = vmatpush1.xpose.msra.mxu0 0.0
    %541 = vmatprep.subr.mxu0 0.0
    %542 = vmatpush1.xpose.msra.mxu0 0.0
    %543 = vmatprep.subr.mxu0 0.0
    %544 = vmatpush1.xpose.msra.mxu0 0.0
    %545 = vmatprep.subr.mxu0 0.0
    %546 = vmatpush1.xpose.msra.mxu0 0.0
    %547 = vmatprep.subr.mxu0 0.0
    %548 = vmatpush1.xpose.msra.mxu0 0.0
    %549 = vmatprep.subr.mxu0 0.0
    %550 = vmatpush1.xpose.msra.mxu0 0.0
    %551 = vmatprep.subr.mxu0 0.0
    %552 = vmatpush1.xpose.msra.mxu0 0.0
    %553 = vmatprep.subr.mxu0 0.0
    %554 = vmatpush1.xpose.msra.mxu0 0.0
    %555 = vmatprep.subr.mxu0 0.0
    %556 = vmatpush1.xpose.msra.mxu0 0.0
    %557 = vmatprep.subr.mxu0 0.0
    %558 = vmatpush1.xpose.msra.mxu0 0.0
    %559 = vmatprep.mubr.f32.mxu0 0.0
    %560 = vmatmul.mubr.f32.gmra.mrb[0].mxu0 %v491
    %v561 = vpop.f32.mrb[0].mxu0
    %v562 = vadd.f32 0.0, %v561
    %v563 = vpop.f32.mrb[0].mxu0
    %564 = vdwg.mxu0
    %565 = vrot.lane.b32.xlu0 %v154, 120
    %v566 = vpop.permute.xlu0 %565
    %567 = vrot.lane.b32.xlu0 %v154, 88
    %v568 = vpop.permute.xlu0 %567
    %v569 = vsel %vm160, %v566, 0
    %v571 = vsel %vm160, %v568, 0
    %573 = vmatprep.subr.mxu0 0.0
    %574 = vmatpush1.xpose.msra.mxu0 %v571
    %575 = vmatprep.subr.mxu0 0.0
    %576 = vmatpush1.xpose.msra.mxu0 0.0
    %577 = vmatprep.subr.mxu0 0.0
    %578 = vmatpush1.xpose.msra.mxu0 0.0
    %579 = vmatprep.subr.mxu0 0.0
    %580 = vmatpush1.xpose.msra.mxu0 0.0
    %581 = vmatprep.subr.mxu0 0.0
    %582 = vmatpush1.xpose.msra.mxu0 0.0
    %583 = vmatprep.subr.mxu0 0.0
    %584 = vmatpush1.xpose.msra.mxu0 0.0
    %585 = vmatprep.subr.mxu0 0.0
    %586 = vmatpush1.xpose.msra.mxu0 0.0
    %587 = vmatprep.subr.mxu0 0.0
    %588 = vmatpush1.xpose.msra.mxu0 0.0
    %589 = vmatprep.subr.mxu0 0.0
    %590 = vmatpush1.xpose.msra.mxu0 0.0
    %591 = vmatprep.subr.mxu0 0.0
    %592 = vmatpush1.xpose.msra.mxu0 0.0
    %593 = vmatprep.subr.mxu0 0.0
    %594 = vmatpush1.xpose.msra.mxu0 0.0
    %595 = vmatprep.subr.mxu0 0.0
    %596 = vmatpush1.xpose.msra.mxu0 0.0
    %597 = vmatprep.subr.mxu0 0.0
    %598 = vmatpush1.xpose.msra.mxu0 0.0
    %599 = vmatprep.subr.mxu0 0.0
    %600 = vmatpush1.xpose.msra.mxu0 0.0
    %601 = vmatprep.subr.mxu0 0.0
    %602 = vmatpush1.xpose.msra.mxu0 0.0
    %603 = vmatprep.subr.mxu0 0.0
    %604 = vmatpush1.xpose.msra.mxu0 0.0
    %605 = vmatprep.subr.mxu0 0.0
    %606 = vmatpush1.xpose.msra.mxu0 0.0
    %607 = vmatprep.subr.mxu0 0.0
    %608 = vmatpush1.xpose.msra.mxu0 0.0
    %609 = vmatprep.subr.mxu0 0.0
    %610 = vmatpush1.xpose.msra.mxu0 0.0
    %611 = vmatprep.subr.mxu0 0.0
    %612 = vmatpush1.xpose.msra.mxu0 0.0
    %613 = vmatprep.subr.mxu0 0.0
    %614 = vmatpush1.xpose.msra.mxu0 0.0
    %615 = vmatprep.subr.mxu0 0.0
    %616 = vmatpush1.xpose.msra.mxu0 0.0
    %617 = vmatprep.subr.mxu0 0.0
    %618 = vmatpush1.xpose.msra.mxu0 0.0
    %619 = vmatprep.subr.mxu0 0.0
    %620 = vmatpush1.xpose.msra.mxu0 0.0
    %621 = vmatprep.subr.mxu0 0.0
    %622 = vmatpush1.xpose.msra.mxu0 0.0
    %623 = vmatprep.subr.mxu0 0.0
    %624 = vmatpush1.xpose.msra.mxu0 0.0
    %625 = vmatprep.subr.mxu0 0.0
    %626 = vmatpush1.xpose.msra.mxu0 0.0
    %627 = vmatprep.subr.mxu0 0.0
    %628 = vmatpush1.xpose.msra.mxu0 0.0
    %629 = vmatprep.subr.mxu0 0.0
    %630 = vmatpush1.xpose.msra.mxu0 0.0
    %631 = vmatprep.subr.mxu0 0.0
    %632 = vmatpush1.xpose.msra.mxu0 0.0
    %633 = vmatprep.subr.mxu0 0.0
    %634 = vmatpush1.xpose.msra.mxu0 0.0
    %635 = vmatprep.subr.mxu0 0.0
    %636 = vmatpush1.xpose.msra.mxu0 0.0
    %637 = vmatprep.mubr.f32.mxu0 0.0
    %638 = vmatmul.mubr.f32.gmra.mrb[0].mxu0 %v569
    %v639 = vpop.f32.mrb[0].mxu0
    %v640 = vadd.f32 0.0, %v639
    %v641 = vpop.f32.mrb[0].mxu0
    %642 = vdwg.mxu0
    %v643 = vsel %vm160, %v562, -inf
    %644 = vmax.xlane.f32.xlu0 %v643
    %v645 = vpop.xlane.xlu0 %644
    %v646 = vsel %vm160, %v640, -inf
    %647 = vmax.xlane.f32.xlu0 %v646
    %v648 = vpop.xlane.xlu0 %647
    %v649 = vsub.f32 %v562, %v645
    %v650 = vsub.f32 %v640, %v648
    %v651 = vmul.f32 %v649, 1.442695
    %v652 = vpow.pop %v651
    %v653 = vmul.f32 %v650, 1.442695
    %v654 = vpow.pop %v653
    %v655 = vsel %vm160, %v652, 0.0
    %656 = vadd.xlane.f32.xlu0 %v655
    %v657 = vpop.xlane.xlu0 %656
    %v658 = vsel %vm160, %v654, 0.0
    %659 = vadd.xlane.f32.xlu0 %v658
    %v660 = vpop.xlane.xlu0 %659
    %v661 = vrcp.pop %v657
    %v662 = vrcp.pop %v660
    %v663 = vmul.f32 %v652, %v661
    %v664 = vmul.f32 %v654, %v662
    %665 = vrot.lane.b32.xlu0 %v149, 56
    %v666 = vpop.permute.xlu0 %665
    %v669 = vsel %vm160, %v663, 0
    %671 = vmatprep.subr.mxu0 0.0
    %672 = vmatpush1.msra.mxu0 %v666
    %673 = vmatprep.subr.mxu0 0.0
    %674 = vmatpush1.msra.mxu0 0.0
    %675 = vmatprep.subr.mxu0 0.0
    %676 = vmatpush1.msra.mxu0 0.0
    %677 = vmatprep.subr.mxu0 0.0
    %678 = vmatpush1.msra.mxu0 0.0
    %679 = vmatprep.subr.mxu0 0.0
    %680 = vmatpush1.msra.mxu0 0.0
    %681 = vmatprep.subr.mxu0 0.0
    %682 = vmatpush1.msra.mxu0 0.0
    %683 = vmatprep.subr.mxu0 0.0
    %684 = vmatpush1.msra.mxu0 0.0
    %685 = vmatprep.subr.mxu0 0.0
    %686 = vmatpush1.msra.mxu0 0.0
    %687 = vmatprep.subr.mxu0 0.0
    %688 = vmatpush1.msra.mxu0 0.0
    %689 = vmatprep.subr.mxu0 0.0
    %690 = vmatpush1.msra.mxu0 0.0
    %691 = vmatprep.subr.mxu0 0.0
    %692 = vmatpush1.msra.mxu0 0.0
    %693 = vmatprep.subr.mxu0 0.0
    %694 = vmatpush1.msra.mxu0 0.0
    %695 = vmatprep.subr.mxu0 0.0
    %696 = vmatpush1.msra.mxu0 0.0
    %697 = vmatprep.subr.mxu0 0.0
    %698 = vmatpush1.msra.mxu0 0.0
    %699 = vmatprep.subr.mxu0 0.0
    %700 = vmatpush1.msra.mxu0 0.0
    %701 = vmatprep.subr.mxu0 0.0
    %702 = vmatpush1.msra.mxu0 0.0
    %703 = vmatprep.subr.mxu0 0.0
    %704 = vmatpush1.msra.mxu0 0.0
    %705 = vmatprep.subr.mxu0 0.0
    %706 = vmatpush1.msra.mxu0 0.0
    %707 = vmatprep.subr.mxu0 0.0
    %708 = vmatpush1.msra.mxu0 0.0
    %709 = vmatprep.subr.mxu0 0.0
    %710 = vmatpush1.msra.mxu0 0.0
    %711 = vmatprep.subr.mxu0 0.0
    %712 = vmatpush1.msra.mxu0 0.0
    %713 = vmatprep.subr.mxu0 0.0
    %714 = vmatpush1.msra.mxu0 0.0
    %715 = vmatprep.subr.mxu0 0.0
    %716 = vmatpush1.msra.mxu0 0.0
    %717 = vmatprep.subr.mxu0 0.0
    %718 = vmatpush1.msra.mxu0 0.0
    %719 = vmatprep.subr.mxu0 0.0
    %720 = vmatpush1.msra.mxu0 0.0
    %721 = vmatprep.subr.mxu0 0.0
    %722 = vmatpush1.msra.mxu0 0.0
    %723 = vmatprep.subr.mxu0 0.0
    %724 = vmatpush1.msra.mxu0 0.0
    %725 = vmatprep.subr.mxu0 0.0
    %726 = vmatpush1.msra.mxu0 0.0
    %727 = vmatprep.subr.mxu0 0.0
    %728 = vmatpush1.msra.mxu0 0.0
    %729 = vmatprep.subr.mxu0 0.0
    %730 = vmatpush1.msra.mxu0 0.0
    %731 = vmatprep.subr.mxu0 0.0
    %732 = vmatpush1.msra.mxu0 0.0
    %733 = vmatprep.subr.mxu0 0.0
    %734 = vmatpush1.msra.mxu0 0.0
    %735 = vmatprep.mubr.f32.mxu0 0.0
    %736 = vmatmul.mubr.f32.gmra.mrb[0].mxu0 %v669
    %v737 = vpop.f32.mrb[0].mxu0
    %v738 = vadd.f32 0.0, %v737
    %v739 = vpop.f32.mrb[0].mxu0
    %740 = vdwg.mxu0
    %741 = vrot.lane.b32.xlu0 %v154, 56
    %v742 = vpop.permute.xlu0 %741
    %v745 = vsel %vm160, %v664, 0
    %747 = vmatprep.subr.mxu0 0.0
    %748 = vmatpush1.msra.mxu0 %v742
    %749 = vmatprep.subr.mxu0 0.0
    %750 = vmatpush1.msra.mxu0 0.0
    %751 = vmatprep.subr.mxu0 0.0
    %752 = vmatpush1.msra.mxu0 0.0
    %753 = vmatprep.subr.mxu0 0.0
    %754 = vmatpush1.msra.mxu0 0.0
    %755 = vmatprep.subr.mxu0 0.0
    %756 = vmatpush1.msra.mxu0 0.0
    %757 = vmatprep.subr.mxu0 0.0
    %758 = vmatpush1.msra.mxu0 0.0
    %759 = vmatprep.subr.mxu0 0.0
    %760 = vmatpush1.msra.mxu0 0.0
    %761 = vmatprep.subr.mxu0 0.0
    %762 = vmatpush1.msra.mxu0 0.0
    %763 = vmatprep.subr.mxu0 0.0
    %764 = vmatpush1.msra.mxu0 0.0
    %765 = vmatprep.subr.mxu0 0.0
    %766 = vmatpush1.msra.mxu0 0.0
    %767 = vmatprep.subr.mxu0 0.0
    %768 = vmatpush1.msra.mxu0 0.0
    %769 = vmatprep.subr.mxu0 0.0
    %770 = vmatpush1.msra.mxu0 0.0
    %771 = vmatprep.subr.mxu0 0.0
    %772 = vmatpush1.msra.mxu0 0.0
    %773 = vmatprep.subr.mxu0 0.0
    %774 = vmatpush1.msra.mxu0 0.0
    %775 = vmatprep.subr.mxu0 0.0
    %776 = vmatpush1.msra.mxu0 0.0
    %777 = vmatprep.subr.mxu0 0.0
    %778 = vmatpush1.msra.mxu0 0.0
    %779 = vmatprep.subr.mxu0 0.0
    %780 = vmatpush1.msra.mxu0 0.0
    %781 = vmatprep.subr.mxu0 0.0
    %782 = vmatpush1.msra.mxu0 0.0
    %783 = vmatprep.subr.mxu0 0.0
    %784 = vmatpush1.msra.mxu0 0.0
    %785 = vmatprep.subr.mxu0 0.0
    %786 = vmatpush1.msra.mxu0 0.0
    %787 = vmatprep.subr.mxu0 0.0
    %788 = vmatpush1.msra.mxu0 0.0
    %789 = vmatprep.subr.mxu0 0.0
    %790 = vmatpush1.msra.mxu0 0.0
    %791 = vmatprep.subr.mxu0 0.0
    %792 = vmatpush1.msra.mxu0 0.0
    %793 = vmatprep.subr.mxu0 0.0
    %794 = vmatpush1.msra.mxu0 0.0
    %795 = vmatprep.subr.mxu0 0.0
    %796 = vmatpush1.msra.mxu0 0.0
    %797 = vmatprep.subr.mxu0 0.0
    %798 = vmatpush1.msra.mxu0 0.0
    %799 = vmatprep.subr.mxu0 0.0
    %800 = vmatpush1.msra.mxu0 0.0
    %801 = vmatprep.subr.mxu0 0.0
    %802 = vmatpush1.msra.mxu0 0.0
    %803 = vmatprep.subr.mxu0 0.0
    %804 = vmatpush1.msra.mxu0 0.0
    %805 = vmatprep.subr.mxu0 0.0
    %806 = vmatpush1.msra.mxu0 0.0
    %807 = vmatprep.subr.mxu0 0.0
    %808 = vmatpush1.msra.mxu0 0.0
    %809 = vmatprep.subr.mxu0 0.0
    %810 = vmatpush1.msra.mxu0 0.0
    %811 = vmatprep.mubr.f32.mxu0 0.0
    %812 = vmatmul.mubr.f32.gmra.mrb[0].mxu0 %v745
    %v813 = vpop.f32.mrb[0].mxu0
    %v814 = vadd.f32 0.0, %v813
    %v815 = vpop.f32.mrb[0].mxu0
    %816 = vdwg.mxu0
    %s817 = scalar_lea.vmem [#allocation7], 8
    %v818 = vld [vmem:[%s817] sm:$0xff]
    %v820 = vsel %vm160, %v738, 0
    %v823 = vsel %vm160, %v814, 0
    %825 = vmatprep.subr.mxu0 0.0
    %826 = vmatpush1.msra.mxu0 %v818
    %827 = vmatprep.subr.mxu0 0.0
    %828 = vmatpush1.msra.mxu0 0.0
    %829 = vmatprep.subr.mxu0 0.0
    %830 = vmatpush1.msra.mxu0 0.0
    %831 = vmatprep.subr.mxu0 0.0
    %832 = vmatpush1.msra.mxu0 0.0
    %833 = vmatprep.subr.mxu0 0.0
    %834 = vmatpush1.msra.mxu0 0.0
    %835 = vmatprep.subr.mxu0 0.0
    %836 = vmatpush1.msra.mxu0 0.0
    %837 = vmatprep.subr.mxu0 0.0
    %838 = vmatpush1.msra.mxu0 0.0
    %839 = vmatprep.subr.mxu0 0.0
    %840 = vmatpush1.msra.mxu0 0.0
    %841 = vmatprep.subr.mxu0 0.0
    %842 = vmatpush1.msra.mxu0 0.0
    %843 = vmatprep.subr.mxu0 0.0
    %844 = vmatpush1.msra.mxu0 0.0
    %845 = vmatprep.subr.mxu0 0.0
    %846 = vmatpush1.msra.mxu0 0.0
    %847 = vmatprep.subr.mxu0 0.0
    %848 = vmatpush1.msra.mxu0 0.0
    %849 = vmatprep.subr.mxu0 0.0
    %850 = vmatpush1.msra.mxu0 0.0
    %851 = vmatprep.subr.mxu0 0.0
    %852 = vmatpush1.msra.mxu0 0.0
    %853 = vmatprep.subr.mxu0 0.0
    %854 = vmatpush1.msra.mxu0 0.0
    %855 = vmatprep.subr.mxu0 0.0
    %856 = vmatpush1.msra.mxu0 0.0
    %857 = vmatprep.subr.mxu0 0.0
    %858 = vmatpush1.msra.mxu0 0.0
    %859 = vmatprep.subr.mxu0 0.0
    %860 = vmatpush1.msra.mxu0 0.0
    %861 = vmatprep.subr.mxu0 0.0
    %862 = vmatpush1.msra.mxu0 0.0
    %863 = vmatprep.subr.mxu0 0.0
    %864 = vmatpush1.msra.mxu0 0.0
    %865 = vmatprep.subr.mxu0 0.0
    %866 = vmatpush1.msra.mxu0 0.0
    %867 = vmatprep.subr.mxu0 0.0
    %868 = vmatpush1.msra.mxu0 0.0
    %869 = vmatprep.subr.mxu0 0.0
    %870 = vmatpush1.msra.mxu0 0.0
    %871 = vmatprep.subr.mxu0 0.0
    %872 = vmatpush1.msra.mxu0 0.0
    %873 = vmatprep.subr.mxu0 0.0
    %874 = vmatpush1.msra.mxu0 0.0
    %875 = vmatprep.subr.mxu0 0.0
    %876 = vmatpush1.msra.mxu0 0.0
    %877 = vmatprep.subr.mxu0 0.0
    %878 = vmatpush1.msra.mxu0 0.0
    %879 = vmatprep.subr.mxu0 0.0
    %880 = vmatpush1.msra.mxu0 0.0
    %881 = vmatprep.subr.mxu0 0.0
    %882 = vmatpush1.msra.mxu0 0.0
    %883 = vmatprep.subr.mxu0 0.0
    %884 = vmatpush1.msra.mxu0 0.0
    %885 = vmatprep.subr.mxu0 0.0
    %886 = vmatpush1.msra.mxu0 0.0
    %887 = vmatprep.subr.mxu0 0.0
    %888 = vmatpush1.msra.mxu0 0.0
    %889 = vmatprep.mubr.f32.mxu0 0.0
    %890 = vmatmul.mubr.f32.gmra.mrb[0].mxu0 %v820
    %v891 = vpop.f32.mrb[0].mxu0
    %v892 = vadd.f32 0.0, %v891
    %v893 = vpop.f32.mrb[0].mxu0
    %894 = vmatprep.mubr.f32.mxu0 0.0
    %895 = vmatmul.mubr.f32.gmra.mrb[0].mxu0 %v823
    %v896 = vpop.f32.mrb[0].mxu0
    %v897 = vadd.f32 0.0, %v896
    %v898 = vpop.f32.mrb[0].mxu0
    %899 = vdwg.mxu0
    %v901 = vsel %vm160, %v407, 0
    %v904 = vsel %vm160, %v483, 0
    %906 = vmatprep.subr.mxu0 0.0
    %907 = vmatpush1.msra.mxu0 %v486
    %908 = vmatprep.subr.mxu0 0.0
    %909 = vmatpush1.msra.mxu0 0.0
    %910 = vmatprep.subr.mxu0 0.0
    %911 = vmatpush1.msra.mxu0 0.0
    %912 = vmatprep.subr.mxu0 0.0
    %913 = vmatpush1.msra.mxu0 0.0
    %914 = vmatprep.subr.mxu0 0.0
    %915 = vmatpush1.msra.mxu0 0.0
    %916 = vmatprep.subr.mxu0 0.0
    %917 = vmatpush1.msra.mxu0 0.0
    %918 = vmatprep.subr.mxu0 0.0
    %919 = vmatpush1.msra.mxu0 0.0
    %920 = vmatprep.subr.mxu0 0.0
    %921 = vmatpush1.msra.mxu0 0.0
    %922 = vmatprep.subr.mxu0 0.0
    %923 = vmatpush1.msra.mxu0 0.0
    %924 = vmatprep.subr.mxu0 0.0
    %925 = vmatpush1.msra.mxu0 0.0
    %926 = vmatprep.subr.mxu0 0.0
    %927 = vmatpush1.msra.mxu0 0.0
    %928 = vmatprep.subr.mxu0 0.0
    %929 = vmatpush1.msra.mxu0 0.0
    %930 = vmatprep.subr.mxu0 0.0
    %931 = vmatpush1.msra.mxu0 0.0
    %932 = vmatprep.subr.mxu0 0.0
    %933 = vmatpush1.msra.mxu0 0.0
    %934 = vmatprep.subr.mxu0 0.0
    %935 = vmatpush1.msra.mxu0 0.0
    %936 = vmatprep.subr.mxu0 0.0
    %937 = vmatpush1.msra.mxu0 0.0
    %938 = vmatprep.subr.mxu0 0.0
    %939 = vmatpush1.msra.mxu0 0.0
    %940 = vmatprep.subr.mxu0 0.0
    %941 = vmatpush1.msra.mxu0 0.0
    %942 = vmatprep.subr.mxu0 0.0
    %943 = vmatpush1.msra.mxu0 0.0
    %944 = vmatprep.subr.mxu0 0.0
    %945 = vmatpush1.msra.mxu0 0.0
    %946 = vmatprep.subr.mxu0 0.0
    %947 = vmatpush1.msra.mxu0 0.0
    %948 = vmatprep.subr.mxu0 0.0
    %949 = vmatpush1.msra.mxu0 0.0
    %950 = vmatprep.subr.mxu0 0.0
    %951 = vmatpush1.msra.mxu0 0.0
    %952 = vmatprep.subr.mxu0 0.0
    %953 = vmatpush1.msra.mxu0 0.0
    %954 = vmatprep.subr.mxu0 0.0
    %955 = vmatpush1.msra.mxu0 0.0
    %956 = vmatprep.subr.mxu0 0.0
    %957 = vmatpush1.msra.mxu0 0.0
    %958 = vmatprep.subr.mxu0 0.0
    %959 = vmatpush1.msra.mxu0 0.0
    %960 = vmatprep.subr.mxu0 0.0
    %961 = vmatpush1.msra.mxu0 0.0
    %962 = vmatprep.subr.mxu0 0.0
    %963 = vmatpush1.msra.mxu0 0.0
    %964 = vmatprep.subr.mxu0 0.0
    %965 = vmatpush1.msra.mxu0 0.0
    %966 = vmatprep.subr.mxu0 0.0
    %967 = vmatpush1.msra.mxu0 0.0
    %968 = vmatprep.subr.mxu0 0.0
    %969 = vmatpush1.msra.mxu0 0.0
    %970 = vmatprep.mubr.f32.mxu0 0.0
    %971 = vmatmul.mubr.f32.gmra.mrb[0].mxu0 %v901
    %v972 = vpop.f32.mrb[0].mxu0
    %v973 = vadd.f32 %v892, %v972
    %v974 = vpop.f32.mrb[0].mxu0
    %975 = vmatprep.mubr.f32.mxu0 0.0
    %976 = vmatmul.mubr.f32.gmra.mrb[0].mxu0 %v904
    %v977 = vpop.f32.mrb[0].mxu0
    %v978 = vadd.f32 %v897, %v977
    %v979 = vpop.f32.mrb[0].mxu0
    %980 = vdwg.mxu0
    %981 = vrot.lane.b32.xlu0 %v149, 112
    %v982 = vpop.permute.xlu0 %981
    %983 = vrot.lane.b32.xlu0 %v149, 80
    %v984 = vpop.permute.xlu0 %983
    %v985 = vsel %vm160, %v982, 0
    %v987 = vsel %vm160, %v984, 0
    %989 = vmatprep.subr.mxu0 0.0
    %990 = vmatpush1.xpose.msra.mxu0 %v987
    %991 = vmatprep.subr.mxu0 0.0
    %992 = vmatpush1.xpose.msra.mxu0 0.0
    %993 = vmatprep.subr.mxu0 0.0
    %994 = vmatpush1.xpose.msra.mxu0 0.0
    %995 = vmatprep.subr.mxu0 0.0
    %996 = vmatpush1.xpose.msra.mxu0 0.0
    %997 = vmatprep.subr.mxu0 0.0
    %998 = vmatpush1.xpose.msra.mxu0 0.0
    %999 = vmatprep.subr.mxu0 0.0
    %1000 = vmatpush1.xpose.msra.mxu0 0.0
    %1001 = vmatprep.subr.mxu0 0.0
    %1002 = vmatpush1.xpose.msra.mxu0 0.0
    %1003 = vmatprep.subr.mxu0 0.0
    %1004 = vmatpush1.xpose.msra.mxu0 0.0
    %1005 = vmatprep.subr.mxu0 0.0
    %1006 = vmatpush1.xpose.msra.mxu0 0.0
    %1007 = vmatprep.subr.mxu0 0.0
    %1008 = vmatpush1.xpose.msra.mxu0 0.0
    %1009 = vmatprep.subr.mxu0 0.0
    %1010 = vmatpush1.xpose.msra.mxu0 0.0
    %1011 = vmatprep.subr.mxu0 0.0
    %1012 = vmatpush1.xpose.msra.mxu0 0.0
    %1013 = vmatprep.subr.mxu0 0.0
    %1014 = vmatpush1.xpose.msra.mxu0 0.0
    %1015 = vmatprep.subr.mxu0 0.0
    %1016 = vmatpush1.xpose.msra.mxu0 0.0
    %1017 = vmatprep.subr.mxu0 0.0
    %1018 = vmatpush1.xpose.msra.mxu0 0.0
    %1019 = vmatprep.subr.mxu0 0.0
    %1020 = vmatpush1.xpose.msra.mxu0 0.0
    %1021 = vmatprep.subr.mxu0 0.0
    %1022 = vmatpush1.xpose.msra.mxu0 0.0
    %1023 = vmatprep.subr.mxu0 0.0
    %1024 = vmatpush1.xpose.msra.mxu0 0.0
    %1025 = vmatprep.subr.mxu0 0.0
    %1026 = vmatpush1.xpose.msra.mxu0 0.0
    %1027 = vmatprep.subr.mxu0 0.0
    %1028 = vmatpush1.xpose.msra.mxu0 0.0
    %1029 = vmatprep.subr.mxu0 0.0
    %1030 = vmatpush1.xpose.msra.mxu0 0.0
    %1031 = vmatprep.subr.mxu0 0.0
    %1032 = vmatpush1.xpose.msra.mxu0 0.0
    %1033 = vmatprep.subr.mxu0 0.0
    %1034 = vmatpush1.xpose.msra.mxu0 0.0
    %1035 = vmatprep.subr.mxu0 0.0
    %1036 = vmatpush1.xpose.msra.mxu0 0.0
    %1037 = vmatprep.subr.mxu0 0.0
    %1038 = vmatpush1.xpose.msra.mxu0 0.0
    %1039 = vmatprep.subr.mxu0 0.0
    %1040 = vmatpush1.xpose.msra.mxu0 0.0
    %1041 = vmatprep.subr.mxu0 0.0
    %1042 = vmatpush1.xpose.msra.mxu0 0.0
    %1043 = vmatprep.subr.mxu0 0.0
    %1044 = vmatpush1.xpose.msra.mxu0 0.0
    %1045 = vmatprep.subr.mxu0 0.0
    %1046 = vmatpush1.xpose.msra.mxu0 0.0
    %1047 = vmatprep.subr.mxu0 0.0
    %1048 = vmatpush1.xpose.msra.mxu0 0.0
    %1049 = vmatprep.subr.mxu0 0.0
    %1050 = vmatpush1.xpose.msra.mxu0 0.0
    %1051 = vmatprep.subr.mxu0 0.0
    %1052 = vmatpush1.xpose.msra.mxu0 0.0
    %1053 = vmatprep.mubr.f32.mxu0 0.0
    %1054 = vmatmul.mubr.f32.gmra.mrb[0].mxu0 %v985
    %v1055 = vpop.f32.mrb[0].mxu0
    %v1056 = vadd.f32 0.0, %v1055
    %v1057 = vpop.f32.mrb[0].mxu0
    %1058 = vdwg.mxu0
    %1059 = vrot.lane.b32.xlu0 %v154, 112
    %v1060 = vpop.permute.xlu0 %1059
    %1061 = vrot.lane.b32.xlu0 %v154, 80
    %v1062 = vpop.permute.xlu0 %1061
    %v1063 = vsel %vm160, %v1060, 0
    %v1065 = vsel %vm160, %v1062, 0
    %1067 = vmatprep.subr.mxu0 0.0
    %1068 = vmatpush1.xpose.msra.mxu0 %v1065
    %1069 = vmatprep.subr.mxu0 0.0
    %1070 = vmatpush1.xpose.msra.mxu0 0.0
    %1071 = vmatprep.subr.mxu0 0.0
    %1072 = vmatpush1.xpose.msra.mxu0 0.0
    %1073 = vmatprep.subr.mxu0 0.0
    %1074 = vmatpush1.xpose.msra.mxu0 0.0
    %1075 = vmatprep.subr.mxu0 0.0
    %1076 = vmatpush1.xpose.msra.mxu0 0.0
    %1077 = vmatprep.subr.mxu0 0.0
    %1078 = vmatpush1.xpose.msra.mxu0 0.0
    %1079 = vmatprep.subr.mxu0 0.0
    %1080 = vmatpush1.xpose.msra.mxu0 0.0
    %1081 = vmatprep.subr.mxu0 0.0
    %1082 = vmatpush1.xpose.msra.mxu0 0.0
    %1083 = vmatprep.subr.mxu0 0.0
    %1084 = vmatpush1.xpose.msra.mxu0 0.0
    %1085 = vmatprep.subr.mxu0 0.0
    %1086 = vmatpush1.xpose.msra.mxu0 0.0
    %1087 = vmatprep.subr.mxu0 0.0
    %1088 = vmatpush1.xpose.msra.mxu0 0.0
    %1089 = vmatprep.subr.mxu0 0.0
    %1090 = vmatpush1.xpose.msra.mxu0 0.0
    %1091 = vmatprep.subr.mxu0 0.0
    %1092 = vmatpush1.xpose.msra.mxu0 0.0
    %1093 = vmatprep.subr.mxu0 0.0
    %1094 = vmatpush1.xpose.msra.mxu0 0.0
    %1095 = vmatprep.subr.mxu0 0.0
    %1096 = vmatpush1.xpose.msra.mxu0 0.0
    %1097 = vmatprep.subr.mxu0 0.0
    %1098 = vmatpush1.xpose.msra.mxu0 0.0
    %1099 = vmatprep.subr.mxu0 0.0
    %1100 = vmatpush1.xpose.msra.mxu0 0.0
    %1101 = vmatprep.subr.mxu0 0.0
    %1102 = vmatpush1.xpose.msra.mxu0 0.0
    %1103 = vmatprep.subr.mxu0 0.0
    %1104 = vmatpush1.xpose.msra.mxu0 0.0
    %1105 = vmatprep.subr.mxu0 0.0
    %1106 = vmatpush1.xpose.msra.mxu0 0.0
    %1107 = vmatprep.subr.mxu0 0.0
    %1108 = vmatpush1.xpose.msra.mxu0 0.0
    %1109 = vmatprep.subr.mxu0 0.0
    %1110 = vmatpush1.xpose.msra.mxu0 0.0
    %1111 = vmatprep.subr.mxu0 0.0
    %1112 = vmatpush1.xpose.msra.mxu0 0.0
    %1113 = vmatprep.subr.mxu0 0.0
    %1114 = vmatpush1.xpose.msra.mxu0 0.0
    %1115 = vmatprep.subr.mxu0 0.0
    %1116 = vmatpush1.xpose.msra.mxu0 0.0
    %1117 = vmatprep.subr.mxu0 0.0
    %1118 = vmatpush1.xpose.msra.mxu0 0.0
    %1119 = vmatprep.subr.mxu0 0.0
    %1120 = vmatpush1.xpose.msra.mxu0 0.0
    %1121 = vmatprep.subr.mxu0 0.0
    %1122 = vmatpush1.xpose.msra.mxu0 0.0
    %1123 = vmatprep.subr.mxu0 0.0
    %1124 = vmatpush1.xpose.msra.mxu0 0.0
    %1125 = vmatprep.subr.mxu0 0.0
    %1126 = vmatpush1.xpose.msra.mxu0 0.0
    %1127 = vmatprep.subr.mxu0 0.0
    %1128 = vmatpush1.xpose.msra.mxu0 0.0
    %1129 = vmatprep.subr.mxu0 0.0
    %1130 = vmatpush1.xpose.msra.mxu0 0.0
    %1131 = vmatprep.mubr.f32.mxu0 0.0
    %1132 = vmatmul.mubr.f32.gmra.mrb[0].mxu0 %v1063
    %v1133 = vpop.f32.mrb[0].mxu0
    %v1134 = vadd.f32 0.0, %v1133
    %v1135 = vpop.f32.mrb[0].mxu0
    %1136 = vdwg.mxu0
    %v1137 = vsel %vm160, %v1056, -inf
    %1138 = vmax.xlane.f32.xlu0 %v1137
    %v1139 = vpop.xlane.xlu0 %1138
    %v1140 = vsel %vm160, %v1134, -inf
    %1141 = vmax.xlane.f32.xlu0 %v1140
    %v1142 = vpop.xlane.xlu0 %1141
    %v1143 = vsub.f32 %v1056, %v1139
    %v1144 = vsub.f32 %v1134, %v1142
    %v1145 = vmul.f32 %v1143, 1.442695
    %v1146 = vpow.pop %v1145
    %v1147 = vmul.f32 %v1144, 1.442695
    %v1148 = vpow.pop %v1147
    %v1149 = vsel %vm160, %v1146, 0.0
    %1150 = vadd.xlane.f32.xlu0 %v1149
    %v1151 = vpop.xlane.xlu0 %1150
    %v1152 = vsel %vm160, %v1148, 0.0
    %1153 = vadd.xlane.f32.xlu0 %v1152
    %v1154 = vpop.xlane.xlu0 %1153
    %v1155 = vrcp.pop %v1151
    %v1156 = vrcp.pop %v1154
    %v1157 = vmul.f32 %v1146, %v1155
    %v1158 = vmul.f32 %v1148, %v1156
    %1159 = vrot.lane.b32.xlu0 %v149, 48
    %v1160 = vpop.permute.xlu0 %1159
    %v1163 = vsel %vm160, %v1157, 0
    %1165 = vmatprep.subr.mxu0 0.0
    %1166 = vmatpush1.msra.mxu0 %v1160
    %1167 = vmatprep.subr.mxu0 0.0
    %1168 = vmatpush1.msra.mxu0 0.0
    %1169 = vmatprep.subr.mxu0 0.0
    %1170 = vmatpush1.msra.mxu0 0.0
    %1171 = vmatprep.subr.mxu0 0.0
    %1172 = vmatpush1.msra.mxu0 0.0
    %1173 = vmatprep.subr.mxu0 0.0
    %1174 = vmatpush1.msra.mxu0 0.0
    %1175 = vmatprep.subr.mxu0 0.0
    %1176 = vmatpush1.msra.mxu0 0.0
    %1177 = vmatprep.subr.mxu0 0.0
    %1178 = vmatpush1.msra.mxu0 0.0
    %1179 = vmatprep.subr.mxu0 0.0
    %1180 = vmatpush1.msra.mxu0 0.0
    %1181 = vmatprep.subr.mxu0 0.0
    %1182 = vmatpush1.msra.mxu0 0.0
    %1183 = vmatprep.subr.mxu0 0.0
    %1184 = vmatpush1.msra.mxu0 0.0
    %1185 = vmatprep.subr.mxu0 0.0
    %1186 = vmatpush1.msra.mxu0 0.0
    %1187 = vmatprep.subr.mxu0 0.0
    %1188 = vmatpush1.msra.mxu0 0.0
    %1189 = vmatprep.subr.mxu0 0.0
    %1190 = vmatpush1.msra.mxu0 0.0
    %1191 = vmatprep.subr.mxu0 0.0
    %1192 = vmatpush1.msra.mxu0 0.0
    %1193 = vmatprep.subr.mxu0 0.0
    %1194 = vmatpush1.msra.mxu0 0.0
    %1195 = vmatprep.subr.mxu0 0.0
    %1196 = vmatpush1.msra.mxu0 0.0
    %1197 = vmatprep.subr.mxu0 0.0
    %1198 = vmatpush1.msra.mxu0 0.0
    %1199 = vmatprep.subr.mxu0 0.0
    %1200 = vmatpush1.msra.mxu0 0.0
    %1201 = vmatprep.subr.mxu0 0.0
    %1202 = vmatpush1.msra.mxu0 0.0
    %1203 = vmatprep.subr.mxu0 0.0
    %1204 = vmatpush1.msra.mxu0 0.0
    %1205 = vmatprep.subr.mxu0 0.0
    %1206 = vmatpush1.msra.mxu0 0.0
    %1207 = vmatprep.subr.mxu0 0.0
    %1208 = vmatpush1.msra.mxu0 0.0
    %1209 = vmatprep.subr.mxu0 0.0
    %1210 = vmatpush1.msra.mxu0 0.0
    %1211 = vmatprep.subr.mxu0 0.0
    %1212 = vmatpush1.msra.mxu0 0.0
    %1213 = vmatprep.subr.mxu0 0.0
    %1214 = vmatpush1.msra.mxu0 0.0
    %1215 = vmatprep.subr.mxu0 0.0
    %1216 = vmatpush1.msra.mxu0 0.0
    %1217 = vmatprep.subr.mxu0 0.0
    %1218 = vmatpush1.msra.mxu0 0.0
    %1219 = vmatprep.subr.mxu0 0.0
    %1220 = vmatpush1.msra.mxu0 0.0
    %1221 = vmatprep.subr.mxu0 0.0
    %1222 = vmatpush1.msra.mxu0 0.0
    %1223 = vmatprep.subr.mxu0 0.0
    %1224 = vmatpush1.msra.mxu0 0.0
    %1225 = vmatprep.subr.mxu0 0.0
    %1226 = vmatpush1.msra.mxu0 0.0
    %1227 = vmatprep.subr.mxu0 0.0
    %1228 = vmatpush1.msra.mxu0 0.0
    %1229 = vmatprep.mubr.f32.mxu0 0.0
    %1230 = vmatmul.mubr.f32.gmra.mrb[0].mxu0 %v1163
    %v1231 = vpop.f32.mrb[0].mxu0
    %v1232 = vadd.f32 0.0, %v1231
    %v1233 = vpop.f32.mrb[0].mxu0
    %1234 = vdwg.mxu0
    %1235 = vrot.lane.b32.xlu0 %v154, 48
    %v1236 = vpop.permute.xlu0 %1235
    %v1239 = vsel %vm160, %v1158, 0
    %1241 = vmatprep.subr.mxu0 0.0
    %1242 = vmatpush1.msra.mxu0 %v1236
    %1243 = vmatprep.subr.mxu0 0.0
    %1244 = vmatpush1.msra.mxu0 0.0
    %1245 = vmatprep.subr.mxu0 0.0
    %1246 = vmatpush1.msra.mxu0 0.0
    %1247 = vmatprep.subr.mxu0 0.0
    %1248 = vmatpush1.msra.mxu0 0.0
    %1249 = vmatprep.subr.mxu0 0.0
    %1250 = vmatpush1.msra.mxu0 0.0
    %1251 = vmatprep.subr.mxu0 0.0
    %1252 = vmatpush1.msra.mxu0 0.0
    %1253 = vmatprep.subr.mxu0 0.0
    %1254 = vmatpush1.msra.mxu0 0.0
    %1255 = vmatprep.subr.mxu0 0.0
    %1256 = vmatpush1.msra.mxu0 0.0
    %1257 = vmatprep.subr.mxu0 0.0
    %1258 = vmatpush1.msra.mxu0 0.0
    %1259 = vmatprep.subr.mxu0 0.0
    %1260 = vmatpush1.msra.mxu0 0.0
    %1261 = vmatprep.subr.mxu0 0.0
    %1262 = vmatpush1.msra.mxu0 0.0
    %1263 = vmatprep.subr.mxu0 0.0
    %1264 = vmatpush1.msra.mxu0 0.0
    %1265 = vmatprep.subr.mxu0 0.0
    %1266 = vmatpush1.msra.mxu0 0.0
    %1267 = vmatprep.subr.mxu0 0.0
    %1268 = vmatpush1.msra.mxu0 0.0
    %1269 = vmatprep.subr.mxu0 0.0
    %1270 = vmatpush1.msra.mxu0 0.0
    %1271 = vmatprep.subr.mxu0 0.0
    %1272 = vmatpush1.msra.mxu0 0.0
    %1273 = vmatprep.subr.mxu0 0.0
    %1274 = vmatpush1.msra.mxu0 0.0
    %1275 = vmatprep.subr.mxu0 0.0
    %1276 = vmatpush1.msra.mxu0 0.0
    %1277 = vmatprep.subr.mxu0 0.0
    %1278 = vmatpush1.msra.mxu0 0.0
    %1279 = vmatprep.subr.mxu0 0.0
    %1280 = vmatpush1.msra.mxu0 0.0
    %1281 = vmatprep.subr.mxu0 0.0
    %1282 = vmatpush1.msra.mxu0 0.0
    %1283 = vmatprep.subr.mxu0 0.0
    %1284 = vmatpush1.msra.mxu0 0.0
    %1285 = vmatprep.subr.mxu0 0.0
    %1286 = vmatpush1.msra.mxu0 0.0
    %1287 = vmatprep.subr.mxu0 0.0
    %1288 = vmatpush1.msra.mxu0 0.0
    %1289 = vmatprep.subr.mxu0 0.0
    %1290 = vmatpush1.msra.mxu0 0.0
    %1291 = vmatprep.subr.mxu0 0.0
    %1292 = vmatpush1.msra.mxu0 0.0
    %1293 = vmatprep.subr.mxu0 0.0
    %1294 = vmatpush1.msra.mxu0 0.0
    %1295 = vmatprep.subr.mxu0 0.0
    %1296 = vmatpush1.msra.mxu0 0.0
    %1297 = vmatprep.subr.mxu0 0.0
    %1298 = vmatpush1.msra.mxu0 0.0
    %1299 = vmatprep.subr.mxu0 0.0
    %1300 = vmatpush1.msra.mxu0 0.0
    %1301 = vmatprep.subr.mxu0 0.0
    %1302 = vmatpush1.msra.mxu0 0.0
    %1303 = vmatprep.subr.mxu0 0.0
    %1304 = vmatpush1.msra.mxu0 0.0
    %1305 = vmatprep.mubr.f32.mxu0 0.0
    %1306 = vmatmul.mubr.f32.gmra.mrb[0].mxu0 %v1239
    %v1307 = vpop.f32.mrb[0].mxu0
    %v1308 = vadd.f32 0.0, %v1307
    %v1309 = vpop.f32.mrb[0].mxu0
    %1310 = vdwg.mxu0
    %s1311 = scalar_lea.vmem [#allocation7], 16
    %v1312 = vld [vmem:[%s1311] sm:$0xff]
    %v1314 = vsel %vm160, %v1232, 0
    %v1317 = vsel %vm160, %v1308, 0
    %1319 = vmatprep.subr.mxu0 0.0
    %1320 = vmatpush1.msra.mxu0 %v1312
    %1321 = vmatprep.subr.mxu0 0.0
    %1322 = vmatpush1.msra.mxu0 0.0
    %1323 = vmatprep.subr.mxu0 0.0
    %1324 = vmatpush1.msra.mxu0 0.0
    %1325 = vmatprep.subr.mxu0 0.0
    %1326 = vmatpush1.msra.mxu0 0.0
    %1327 = vmatprep.subr.mxu0 0.0
    %1328 = vmatpush1.msra.mxu0 0.0
    %1329 = vmatprep.subr.mxu0 0.0
    %1330 = vmatpush1.msra.mxu0 0.0
    %1331 = vmatprep.subr.mxu0 0.0
    %1332 = vmatpush1.msra.mxu0 0.0
    %1333 = vmatprep.subr.mxu0 0.0
    %1334 = vmatpush1.msra.mxu0 0.0
    %1335 = vmatprep.subr.mxu0 0.0
    %1336 = vmatpush1.msra.mxu0 0.0
    %1337 = vmatprep.subr.mxu0 0.0
    %1338 = vmatpush1.msra.mxu0 0.0
    %1339 = vmatprep.subr.mxu0 0.0
    %1340 = vmatpush1.msra.mxu0 0.0
    %1341 = vmatprep.subr.mxu0 0.0
    %1342 = vmatpush1.msra.mxu0 0.0
    %1343 = vmatprep.subr.mxu0 0.0
    %1344 = vmatpush1.msra.mxu0 0.0
    %1345 = vmatprep.subr.mxu0 0.0
    %1346 = vmatpush1.msra.mxu0 0.0
    %1347 = vmatprep.subr.mxu0 0.0
    %1348 = vmatpush1.msra.mxu0 0.0
    %1349 = vmatprep.subr.mxu0 0.0
    %1350 = vmatpush1.msra.mxu0 0.0
    %1351 = vmatprep.subr.mxu0 0.0
    %1352 = vmatpush1.msra.mxu0 0.0
    %1353 = vmatprep.subr.mxu0 0.0
    %1354 = vmatpush1.msra.mxu0 0.0
    %1355 = vmatprep.subr.mxu0 0.0
    %1356 = vmatpush1.msra.mxu0 0.0
    %1357 = vmatprep.subr.mxu0 0.0
    %1358 = vmatpush1.msra.mxu0 0.0
    %1359 = vmatprep.subr.mxu0 0.0
    %1360 = vmatpush1.msra.mxu0 0.0
    %1361 = vmatprep.subr.mxu0 0.0
    %1362 = vmatpush1.msra.mxu0 0.0
    %1363 = vmatprep.subr.mxu0 0.0
    %1364 = vmatpush1.msra.mxu0 0.0
    %1365 = vmatprep.subr.mxu0 0.0
    %1366 = vmatpush1.msra.mxu0 0.0
    %1367 = vmatprep.subr.mxu0 0.0
    %1368 = vmatpush1.msra.mxu0 0.0
    %1369 = vmatprep.subr.mxu0 0.0
    %1370 = vmatpush1.msra.mxu0 0.0
    %1371 = vmatprep.subr.mxu0 0.0
    %1372 = vmatpush1.msra.mxu0 0.0
    %1373 = vmatprep.subr.mxu0 0.0
    %1374 = vmatpush1.msra.mxu0 0.0
    %1375 = vmatprep.subr.mxu0 0.0
    %1376 = vmatpush1.msra.mxu0 0.0
    %1377 = vmatprep.subr.mxu0 0.0
    %1378 = vmatpush1.msra.mxu0 0.0
    %1379 = vmatprep.subr.mxu0 0.0
    %1380 = vmatpush1.msra.mxu0 0.0
    %1381 = vmatprep.subr.mxu0 0.0
    %1382 = vmatpush1.msra.mxu0 0.0
    %1383 = vmatprep.mubr.f32.mxu0 0.0
    %1384 = vmatmul.mubr.f32.gmra.mrb[0].mxu0 %v1314
    %v1385 = vpop.f32.mrb[0].mxu0
    %v1386 = vadd.f32 0.0, %v1385
    %v1387 = vpop.f32.mrb[0].mxu0
    %1388 = vmatprep.mubr.f32.mxu0 0.0
    %1389 = vmatmul.mubr.f32.gmra.mrb[0].mxu0 %v1317
    %v1390 = vpop.f32.mrb[0].mxu0
    %v1391 = vadd.f32 0.0, %v1390
    %v1392 = vpop.f32.mrb[0].mxu0
    %1393 = vdwg.mxu0
    %v1394 = vadd.f32 %v973, %v1386
    %v1395 = vadd.f32 %v978, %v1391
    %1396 = vrot.lane.b32.xlu0 %v149, 104
    %v1397 = vpop.permute.xlu0 %1396
    %1398 = vrot.lane.b32.xlu0 %v149, 72
    %v1399 = vpop.permute.xlu0 %1398
    %v1400 = vsel %vm160, %v1397, 0
    %v1402 = vsel %vm160, %v1399, 0
    %1404 = vmatprep.subr.mxu0 0.0
    %1405 = vmatpush1.xpose.msra.mxu0 %v1402
    %1406 = vmatprep.subr.mxu0 0.0
    %1407 = vmatpush1.xpose.msra.mxu0 0.0
    %1408 = vmatprep.subr.mxu0 0.0
    %1409 = vmatpush1.xpose.msra.mxu0 0.0
    %1410 = vmatprep.subr.mxu0 0.0
    %1411 = vmatpush1.xpose.msra.mxu0 0.0
    %1412 = vmatprep.subr.mxu0 0.0
    %1413 = vmatpush1.xpose.msra.mxu0 0.0
    %1414 = vmatprep.subr.mxu0 0.0
    %1415 = vmatpush1.xpose.msra.mxu0 0.0
    %1416 = vmatprep.subr.mxu0 0.0
    %1417 = vmatpush1.xpose.msra.mxu0 0.0
    %1418 = vmatprep.subr.mxu0 0.0
    %1419 = vmatpush1.xpose.msra.mxu0 0.0
    %1420 = vmatprep.subr.mxu0 0.0
    %1421 = vmatpush1.xpose.msra.mxu0 0.0
    %1422 = vmatprep.subr.mxu0 0.0
    %1423 = vmatpush1.xpose.msra.mxu0 0.0
    %1424 = vmatprep.subr.mxu0 0.0
    %1425 = vmatpush1.xpose.msra.mxu0 0.0
    %1426 = vmatprep.subr.mxu0 0.0
    %1427 = vmatpush1.xpose.msra.mxu0 0.0
    %1428 = vmatprep.subr.mxu0 0.0
    %1429 = vmatpush1.xpose.msra.mxu0 0.0
    %1430 = vmatprep.subr.mxu0 0.0
    %1431 = vmatpush1.xpose.msra.mxu0 0.0
    %1432 = vmatprep.subr.mxu0 0.0
    %1433 = vmatpush1.xpose.msra.mxu0 0.0
    %1434 = vmatprep.subr.mxu0 0.0
    %1435 = vmatpush1.xpose.msra.mxu0 0.0
    %1436 = vmatprep.subr.mxu0 0.0
    %1437 = vmatpush1.xpose.msra.mxu0 0.0
    %1438 = vmatprep.subr.mxu0 0.0
    %1439 = vmatpush1.xpose.msra.mxu0 0.0
    %1440 = vmatprep.subr.mxu0 0.0
    %1441 = vmatpush1.xpose.msra.mxu0 0.0
    %1442 = vmatprep.subr.mxu0 0.0
    %1443 = vmatpush1.xpose.msra.mxu0 0.0
    %1444 = vmatprep.subr.mxu0 0.0
    %1445 = vmatpush1.xpose.msra.mxu0 0.0
    %1446 = vmatprep.subr.mxu0 0.0
    %1447 = vmatpush1.xpose.msra.mxu0 0.0
    %1448 = vmatprep.subr.mxu0 0.0
    %1449 = vmatpush1.xpose.msra.mxu0 0.0
    %1450 = vmatprep.subr.mxu0 0.0
    %1451 = vmatpush1.xpose.msra.mxu0 0.0
    %1452 = vmatprep.subr.mxu0 0.0
    %1453 = vmatpush1.xpose.msra.mxu0 0.0
    %1454 = vmatprep.subr.mxu0 0.0
    %1455 = vmatpush1.xpose.msra.mxu0 0.0
    %1456 = vmatprep.subr.mxu0 0.0
    %1457 = vmatpush1.xpose.msra.mxu0 0.0
    %1458 = vmatprep.subr.mxu0 0.0
    %1459 = vmatpush1.xpose.msra.mxu0 0.0
    %1460 = vmatprep.subr.mxu0 0.0
    %1461 = vmatpush1.xpose.msra.mxu0 0.0
    %1462 = vmatprep.subr.mxu0 0.0
    %1463 = vmatpush1.xpose.msra.mxu0 0.0
    %1464 = vmatprep.subr.mxu0 0.0
    %1465 = vmatpush1.xpose.msra.mxu0 0.0
    %1466 = vmatprep.subr.mxu0 0.0
    %1467 = vmatpush1.xpose.msra.mxu0 0.0
    %1468 = vmatprep.mubr.f32.mxu0 0.0
    %1469 = vmatmul.mubr.f32.gmra.mrb[0].mxu0 %v1400
    %v1470 = vpop.f32.mrb[0].mxu0
    %v1471 = vadd.f32 0.0, %v1470
    %v1472 = vpop.f32.mrb[0].mxu0
    %1473 = vdwg.mxu0
    %1474 = vrot.lane.b32.xlu0 %v154, 104
    %v1475 = vpop.permute.xlu0 %1474
    %1476 = vrot.lane.b32.xlu0 %v154, 72
    %v1477 = vpop.permute.xlu0 %1476
    %v1478 = vsel %vm160, %v1475, 0
    %v1480 = vsel %vm160, %v1477, 0
    %1482 = vmatprep.subr.mxu0 0.0
    %1483 = vmatpush1.xpose.msra.mxu0 %v1480
    %1484 = vmatprep.subr.mxu0 0.0
    %1485 = vmatpush1.xpose.msra.mxu0 0.0
    %1486 = vmatprep.subr.mxu0 0.0
    %1487 = vmatpush1.xpose.msra.mxu0 0.0
    %1488 = vmatprep.subr.mxu0 0.0
    %1489 = vmatpush1.xpose.msra.mxu0 0.0
    %1490 = vmatprep.subr.mxu0 0.0
    %1491 = vmatpush1.xpose.msra.mxu0 0.0
    %1492 = vmatprep.subr.mxu0 0.0
    %1493 = vmatpush1.xpose.msra.mxu0 0.0
    %1494 = vmatprep.subr.mxu0 0.0
    %1495 = vmatpush1.xpose.msra.mxu0 0.0
    %1496 = vmatprep.subr.mxu0 0.0
    %1497 = vmatpush1.xpose.msra.mxu0 0.0
    %1498 = vmatprep.subr.mxu0 0.0
    %1499 = vmatpush1.xpose.msra.mxu0 0.0
    %1500 = vmatprep.subr.mxu0 0.0
    %1501 = vmatpush1.xpose.msra.mxu0 0.0
    %1502 = vmatprep.subr.mxu0 0.0
    %1503 = vmatpush1.xpose.msra.mxu0 0.0
    %1504 = vmatprep.subr.mxu0 0.0
    %1505 = vmatpush1.xpose.msra.mxu0 0.0
    %1506 = vmatprep.subr.mxu0 0.0
    %1507 = vmatpush1.xpose.msra.mxu0 0.0
    %1508 = vmatprep.subr.mxu0 0.0
    %1509 = vmatpush1.xpose.msra.mxu0 0.0
    %1510 = vmatprep.subr.mxu0 0.0
    %1511 = vmatpush1.xpose.msra.mxu0 0.0
    %1512 = vmatprep.subr.mxu0 0.0
    %1513 = vmatpush1.xpose.msra.mxu0 0.0
    %1514 = vmatprep.subr.mxu0 0.0
    %1515 = vmatpush1.xpose.msra.mxu0 0.0
    %1516 = vmatprep.subr.mxu0 0.0
    %1517 = vmatpush1.xpose.msra.mxu0 0.0
    %1518 = vmatprep.subr.mxu0 0.0
    %1519 = vmatpush1.xpose.msra.mxu0 0.0
    %1520 = vmatprep.subr.mxu0 0.0
    %1521 = vmatpush1.xpose.msra.mxu0 0.0
    %1522 = vmatprep.subr.mxu0 0.0
    %1523 = vmatpush1.xpose.msra.mxu0 0.0
    %1524 = vmatprep.subr.mxu0 0.0
    %1525 = vmatpush1.xpose.msra.mxu0 0.0
    %1526 = vmatprep.subr.mxu0 0.0
    %1527 = vmatpush1.xpose.msra.mxu0 0.0
    %1528 = vmatprep.subr.mxu0 0.0
    %1529 = vmatpush1.xpose.msra.mxu0 0.0
    %1530 = vmatprep.subr.mxu0 0.0
    %1531 = vmatpush1.xpose.msra.mxu0 0.0
    %1532 = vmatprep.subr.mxu0 0.0
    %1533 = vmatpush1.xpose.msra.mxu0 0.0
    %1534 = vmatprep.subr.mxu0 0.0
    %1535 = vmatpush1.xpose.msra.mxu0 0.0
    %1536 = vmatprep.subr.mxu0 0.0
    %1537 = vmatpush1.xpose.msra.mxu0 0.0
    %1538 = vmatprep.subr.mxu0 0.0
    %1539 = vmatpush1.xpose.msra.mxu0 0.0
    %1540 = vmatprep.subr.mxu0 0.0
    %1541 = vmatpush1.xpose.msra.mxu0 0.0
    %1542 = vmatprep.subr.mxu0 0.0
    %1543 = vmatpush1.xpose.msra.mxu0 0.0
    %1544 = vmatprep.subr.mxu0 0.0
    %1545 = vmatpush1.xpose.msra.mxu0 0.0
    %1546 = vmatprep.mubr.f32.mxu0 0.0
    %1547 = vmatmul.mubr.f32.gmra.mrb[0].mxu0 %v1478
    %v1548 = vpop.f32.mrb[0].mxu0
    %v1549 = vadd.f32 0.0, %v1548
    %v1550 = vpop.f32.mrb[0].mxu0
    %1551 = vdwg.mxu0
    %v1552 = vsel %vm160, %v1471, -inf
    %1553 = vmax.xlane.f32.xlu0 %v1552
    %v1554 = vpop.xlane.xlu0 %1553
    %v1555 = vsel %vm160, %v1549, -inf
    %1556 = vmax.xlane.f32.xlu0 %v1555
    %v1557 = vpop.xlane.xlu0 %1556
    %v1558 = vsub.f32 %v1471, %v1554
    %v1559 = vsub.f32 %v1549, %v1557
    %v1560 = vmul.f32 %v1558, 1.442695
    %v1561 = vpow.pop %v1560
    %v1562 = vmul.f32 %v1559, 1.442695
    %v1563 = vpow.pop %v1562
    %v1564 = vsel %vm160, %v1561, 0.0
    %1565 = vadd.xlane.f32.xlu0 %v1564
    %v1566 = vpop.xlane.xlu0 %1565
    %v1567 = vsel %vm160, %v1563, 0.0
    %1568 = vadd.xlane.f32.xlu0 %v1567
    %v1569 = vpop.xlane.xlu0 %1568
    %v1570 = vrcp.pop %v1566
    %v1571 = vrcp.pop %v1569
    %v1572 = vmul.f32 %v1561, %v1570
    %v1573 = vmul.f32 %v1563, %v1571
    %1574 = vrot.lane.b32.xlu0 %v149, 40
    %v1575 = vpop.permute.xlu0 %1574
    %v1578 = vsel %vm160, %v1572, 0
    %1580 = vmatprep.subr.mxu0 0.0
    %1581 = vmatpush1.msra.mxu0 %v1575
    %1582 = vmatprep.subr.mxu0 0.0
    %1583 = vmatpush1.msra.mxu0 0.0
    %1584 = vmatprep.subr.mxu0 0.0
    %1585 = vmatpush1.msra.mxu0 0.0
    %1586 = vmatprep.subr.mxu0 0.0
    %1587 = vmatpush1.msra.mxu0 0.0
    %1588 = vmatprep.subr.mxu0 0.0
    %1589 = vmatpush1.msra.mxu0 0.0
    %1590 = vmatprep.subr.mxu0 0.0
    %1591 = vmatpush1.msra.mxu0 0.0
    %1592 = vmatprep.subr.mxu0 0.0
    %1593 = vmatpush1.msra.mxu0 0.0
    %1594 = vmatprep.subr.mxu0 0.0
    %1595 = vmatpush1.msra.mxu0 0.0
    %1596 = vmatprep.subr.mxu0 0.0
    %1597 = vmatpush1.msra.mxu0 0.0
    %1598 = vmatprep.subr.mxu0 0.0
    %1599 = vmatpush1.msra.mxu0 0.0
    %1600 = vmatprep.subr.mxu0 0.0
    %1601 = vmatpush1.msra.mxu0 0.0
    %1602 = vmatprep.subr.mxu0 0.0
    %1603 = vmatpush1.msra.mxu0 0.0
    %1604 = vmatprep.subr.mxu0 0.0
    %1605 = vmatpush1.msra.mxu0 0.0
    %1606 = vmatprep.subr.mxu0 0.0
    %1607 = vmatpush1.msra.mxu0 0.0
    %1608 = vmatprep.subr.mxu0 0.0
    %1609 = vmatpush1.msra.mxu0 0.0
    %1610 = vmatprep.subr.mxu0 0.0
    %1611 = vmatpush1.msra.mxu0 0.0
    %1612 = vmatprep.subr.mxu0 0.0
    %1613 = vmatpush1.msra.mxu0 0.0
    %1614 = vmatprep.subr.mxu0 0.0
    %1615 = vmatpush1.msra.mxu0 0.0
    %1616 = vmatprep.subr.mxu0 0.0
    %1617 = vmatpush1.msra.mxu0 0.0
    %1618 = vmatprep.subr.mxu0 0.0
    %1619 = vmatpush1.msra.mxu0 0.0
    %1620 = vmatprep.subr.mxu0 0.0
    %1621 = vmatpush1.msra.mxu0 0.0
    %1622 = vmatprep.subr.mxu0 0.0
    %1623 = vmatpush1.msra.mxu0 0.0
    %1624 = vmatprep.subr.mxu0 0.0
    %1625 = vmatpush1.msra.mxu0 0.0
    %1626 = vmatprep.subr.mxu0 0.0
    %1627 = vmatpush1.msra.mxu0 0.0
    %1628 = vmatprep.subr.mxu0 0.0
    %1629 = vmatpush1.msra.mxu0 0.0
    %1630 = vmatprep.subr.mxu0 0.0
    %1631 = vmatpush1.msra.mxu0 0.0
    %1632 = vmatprep.subr.mxu0 0.0
    %1633 = vmatpush1.msra.mxu0 0.0
    %1634 = vmatprep.subr.mxu0 0.0
    %1635 = vmatpush1.msra.mxu0 0.0
    %1636 = vmatprep.subr.mxu0 0.0
    %1637 = vmatpush1.msra.mxu0 0.0
    %1638 = vmatprep.subr.mxu0 0.0
    %1639 = vmatpush1.msra.mxu0 0.0
    %1640 = vmatprep.subr.mxu0 0.0
    %1641 = vmatpush1.msra.mxu0 0.0
    %1642 = vmatprep.subr.mxu0 0.0
    %1643 = vmatpush1.msra.mxu0 0.0
    %1644 = vmatprep.mubr.f32.mxu0 0.0
    %1645 = vmatmul.mubr.f32.gmra.mrb[0].mxu0 %v1578
    %v1646 = vpop.f32.mrb[0].mxu0
    %v1647 = vadd.f32 0.0, %v1646
    %v1648 = vpop.f32.mrb[0].mxu0
    %1649 = vdwg.mxu0
    %1650 = vrot.lane.b32.xlu0 %v154, 40
    %v1651 = vpop.permute.xlu0 %1650
    %v1654 = vsel %vm160, %v1573, 0
    %1656 = vmatprep.subr.mxu0 0.0
    %1657 = vmatpush1.msra.mxu0 %v1651
    %1658 = vmatprep.subr.mxu0 0.0
    %1659 = vmatpush1.msra.mxu0 0.0
    %1660 = vmatprep.subr.mxu0 0.0
    %1661 = vmatpush1.msra.mxu0 0.0
    %1662 = vmatprep.subr.mxu0 0.0
    %1663 = vmatpush1.msra.mxu0 0.0
    %1664 = vmatprep.subr.mxu0 0.0
    %1665 = vmatpush1.msra.mxu0 0.0
    %1666 = vmatprep.subr.mxu0 0.0
    %1667 = vmatpush1.msra.mxu0 0.0
    %1668 = vmatprep.subr.mxu0 0.0
    %1669 = vmatpush1.msra.mxu0 0.0
    %1670 = vmatprep.subr.mxu0 0.0
    %1671 = vmatpush1.msra.mxu0 0.0
    %1672 = vmatprep.subr.mxu0 0.0
    %1673 = vmatpush1.msra.mxu0 0.0
    %1674 = vmatprep.subr.mxu0 0.0
    %1675 = vmatpush1.msra.mxu0 0.0
    %1676 = vmatprep.subr.mxu0 0.0
    %1677 = vmatpush1.msra.mxu0 0.0
    %1678 = vmatprep.subr.mxu0 0.0
    %1679 = vmatpush1.msra.mxu0 0.0
    %1680 = vmatprep.subr.mxu0 0.0
    %1681 = vmatpush1.msra.mxu0 0.0
    %1682 = vmatprep.subr.mxu0 0.0
    %1683 = vmatpush1.msra.mxu0 0.0
    %1684 = vmatprep.subr.mxu0 0.0
    %1685 = vmatpush1.msra.mxu0 0.0
    %1686 = vmatprep.subr.mxu0 0.0
    %1687 = vmatpush1.msra.mxu0 0.0
    %1688 = vmatprep.subr.mxu0 0.0
    %1689 = vmatpush1.msra.mxu0 0.0
    %1690 = vmatprep.subr.mxu0 0.0
    %1691 = vmatpush1.msra.mxu0 0.0
    %1692 = vmatprep.subr.mxu0 0.0
    %1693 = vmatpush1.msra.mxu0 0.0
    %1694 = vmatprep.subr.mxu0 0.0
    %1695 = vmatpush1.msra.mxu0 0.0
    %1696 = vmatprep.subr.mxu0 0.0
    %1697 = vmatpush1.msra.mxu0 0.0
    %1698 = vmatprep.subr.mxu0 0.0
    %1699 = vmatpush1.msra.mxu0 0.0
    %1700 = vmatprep.subr.mxu0 0.0
    %1701 = vmatpush1.msra.mxu0 0.0
    %1702 = vmatprep.subr.mxu0 0.0
    %1703 = vmatpush1.msra.mxu0 0.0
    %1704 = vmatprep.subr.mxu0 0.0
    %1705 = vmatpush1.msra.mxu0 0.0
    %1706 = vmatprep.subr.mxu0 0.0
    %1707 = vmatpush1.msra.mxu0 0.0
    %1708 = vmatprep.subr.mxu0 0.0
    %1709 = vmatpush1.msra.mxu0 0.0
    %1710 = vmatprep.subr.mxu0 0.0
    %1711 = vmatpush1.msra.mxu0 0.0
    %1712 = vmatprep.subr.mxu0 0.0
    %1713 = vmatpush1.msra.mxu0 0.0
    %1714 = vmatprep.subr.mxu0 0.0
    %1715 = vmatpush1.msra.mxu0 0.0
    %1716 = vmatprep.subr.mxu0 0.0
    %1717 = vmatpush1.msra.mxu0 0.0
    %1718 = vmatprep.subr.mxu0 0.0
    %1719 = vmatpush1.msra.mxu0 0.0
    %1720 = vmatprep.mubr.f32.mxu0 0.0
    %1721 = vmatmul.mubr.f32.gmra.mrb[0].mxu0 %v1654
    %v1722 = vpop.f32.mrb[0].mxu0
    %v1723 = vadd.f32 0.0, %v1722
    %v1724 = vpop.f32.mrb[0].mxu0
    %1725 = vdwg.mxu0
    %s1726 = scalar_lea.vmem [#allocation7], 24
    %v1727 = vld [vmem:[%s1726] sm:$0xff]
    %v1729 = vsel %vm160, %v1647, 0
    %v1732 = vsel %vm160, %v1723, 0
    %1734 = vmatprep.subr.mxu0 0.0
    %1735 = vmatpush1.msra.mxu0 %v1727
    %1736 = vmatprep.subr.mxu0 0.0
    %1737 = vmatpush1.msra.mxu0 0.0
    %1738 = vmatprep.subr.mxu0 0.0
    %1739 = vmatpush1.msra.mxu0 0.0
    %1740 = vmatprep.subr.mxu0 0.0
    %1741 = vmatpush1.msra.mxu0 0.0
    %1742 = vmatprep.subr.mxu0 0.0
    %1743 = vmatpush1.msra.mxu0 0.0
    %1744 = vmatprep.subr.mxu0 0.0
    %1745 = vmatpush1.msra.mxu0 0.0
    %1746 = vmatprep.subr.mxu0 0.0
    %1747 = vmatpush1.msra.mxu0 0.0
    %1748 = vmatprep.subr.mxu0 0.0
    %1749 = vmatpush1.msra.mxu0 0.0
    %1750 = vmatprep.subr.mxu0 0.0
    %1751 = vmatpush1.msra.mxu0 0.0
    %1752 = vmatprep.subr.mxu0 0.0
    %1753 = vmatpush1.msra.mxu0 0.0
    %1754 = vmatprep.subr.mxu0 0.0
    %1755 = vmatpush1.msra.mxu0 0.0
    %1756 = vmatprep.subr.mxu0 0.0
    %1757 = vmatpush1.msra.mxu0 0.0
    %1758 = vmatprep.subr.mxu0 0.0
    %1759 = vmatpush1.msra.mxu0 0.0
    %1760 = vmatprep.subr.mxu0 0.0
    %1761 = vmatpush1.msra.mxu0 0.0
    %1762 = vmatprep.subr.mxu0 0.0
    %1763 = vmatpush1.msra.mxu0 0.0
    %1764 = vmatprep.subr.mxu0 0.0
    %1765 = vmatpush1.msra.mxu0 0.0
    %1766 = vmatprep.subr.mxu0 0.0
    %1767 = vmatpush1.msra.mxu0 0.0
    %1768 = vmatprep.subr.mxu0 0.0
    %1769 = vmatpush1.msra.mxu0 0.0
    %1770 = vmatprep.subr.mxu0 0.0
    %1771 = vmatpush1.msra.mxu0 0.0
    %1772 = vmatprep.subr.mxu0 0.0
    %1773 = vmatpush1.msra.mxu0 0.0
    %1774 = vmatprep.subr.mxu0 0.0
    %1775 = vmatpush1.msra.mxu0 0.0
    %1776 = vmatprep.subr.mxu0 0.0
    %1777 = vmatpush1.msra.mxu0 0.0
    %1778 = vmatprep.subr.mxu0 0.0
    %1779 = vmatpush1.msra.mxu0 0.0
    %1780 = vmatprep.subr.mxu0 0.0
    %1781 = vmatpush1.msra.mxu0 0.0
    %1782 = vmatprep.subr.mxu0 0.0
    %1783 = vmatpush1.msra.mxu0 0.0
    %1784 = vmatprep.subr.mxu0 0.0
    %1785 = vmatpush1.msra.mxu0 0.0
    %1786 = vmatprep.subr.mxu0 0.0
    %1787 = vmatpush1.msra.mxu0 0.0
    %1788 = vmatprep.subr.mxu0 0.0
    %1789 = vmatpush1.msra.mxu0 0.0
    %1790 = vmatprep.subr.mxu0 0.0
    %1791 = vmatpush1.msra.mxu0 0.0
    %1792 = vmatprep.subr.mxu0 0.0
    %1793 = vmatpush1.msra.mxu0 0.0
    %1794 = vmatprep.subr.mxu0 0.0
    %1795 = vmatpush1.msra.mxu0 0.0
    %1796 = vmatprep.subr.mxu0 0.0
    %1797 = vmatpush1.msra.mxu0 0.0
    %1798 = vmatprep.mubr.f32.mxu0 0.0
    %1799 = vmatmul.mubr.f32.gmra.mrb[0].mxu0 %v1729
    %v1800 = vpop.f32.mrb[0].mxu0
    %v1801 = vadd.f32 0.0, %v1800
    %v1802 = vpop.f32.mrb[0].mxu0
    %1803 = vmatprep.mubr.f32.mxu0 0.0
    %1804 = vmatmul.mubr.f32.gmra.mrb[0].mxu0 %v1732
    %v1805 = vpop.f32.mrb[0].mxu0
    %v1806 = vadd.f32 0.0, %v1805
    %v1807 = vpop.f32.mrb[0].mxu0
    %1808 = vdwg.mxu0
    %v1809 = vadd.f32 %v1394, %v1801
    %v1810 = vadd.f32 %v1395, %v1806
    %v1811 = vld [vmem:[%s4] sm:$0x1]
    %v1813 = vlaneseq
    %v1814 = vshrl.u32 %v1813, 7
    %v1815 = vsub.s32 0, %v1814
    %v1816 = vrot.slane %v1811, %v1815
    %v1818 = vadd.f32 %v1809, %v1816
    %v1819 = vadd.f32 %v1810, %v1816
    %v1820 = vadd.f32 %v62, %v1818
    %v1821 = vadd.f32 %v63, %v1819
    %1822 = vst.msk [vmem:[#allocation8] sm:$0xff] %vm75, %v1820
    %1823 = vst.msk [vmem:[#allocation8 + $0x8] sm:$0xff] %vm75, %v1821
    // Predicated region
    $region34: #{tpu_custom_call.1} parent=1 // pred_check
      _
    $region35: #{tpu_custom_call.1} parent=1 // pred_check_branch
      %1825 = sbr.rel (0) target = $region37
    $region36: #{tpu_custom_call.1} parent=1 // pred_region
      %s1827 = ssub.s32 256, 256
      %1828 = vsyncadd [#allocation4], %s1827
      %s1829 = sshll.u32 [#allocation8], 4
      %s1830 = int_to_ptr.vmem [resolvable:$true] %s1829
      %1835 = dma.vmem_to_hbm [thread:$0]  %s1830, 256, %s5, [#allocation4], 128, 128, 8
    $region37: #{tpu_custom_call.1} parent=1 // pred_fallthru
      _
    // Predicated region
    $region38: #{tpu_custom_call.1} parent=1 // pred_check
      _
    $region39: #{tpu_custom_call.1} parent=1 // pred_check_branch
      %1837 = sbr.rel (0) target = $region41
    $region40: #{tpu_custom_call.1} parent=1 // pred_region
      %1838 = dma.done [#allocation4], 256
    $region41: #{tpu_custom_call.1} parent=1 // pred_fallthru
      _
    %1839 = vsyncpa [#allocation3], 1
    %1840 = vsyncpa [#allocation6], 1
    %1841 = vsyncpa [#allocation4], 1

</llo_original>
